<compile_context>
chip_gen: v5e
topology: v5e:2x2
jax: 0.10.0
libtpu: 0.0.40
codegen_flags: <defaults>
</compile_context>

<pallas_src>
import functools

import jax
import jax.numpy as jnp
from jax.experimental import pallas as pl
from jax.experimental.pallas import tpu as pltpu


# -------------------- Pallas kernel --------------------

def _lstm_kernel(T_total, T_pad,
                 x_ref, wih_ref, whh_ref, b_ref, wlin_ref, blin_ref,
                 out_ref, h_ref, c_ref):
    """Grid = (batch_tiles, time_chunks).  h_ref/c_ref persist across chunks."""
    t_idx = pl.program_id(1)
    TC, BT, D = x_ref.shape          # time-chunk length, batch tile, num_sensors
    Hp = whh_ref.shape[0]            # lane-padded hidden size (multiple of 128)

    @pl.when(t_idx == 0)
    def _init():
        h_ref[...] = jnp.zeros_like(h_ref)
        c_ref[...] = jnp.zeros_like(c_ref)

    # Input projection + fused bias for the whole chunk in ONE MXU matmul,
    # off the serial critical path.  (TC, BT, D) -> (TC*BT, D) is layout-free.
    xc = x_ref[...].reshape(TC * BT, D)
    gx = jnp.dot(xc, wih_ref[...], preferred_element_type=jnp.float32) + b_ref[...]

    whh = whh_ref[...]
    h = h_ref[...]
    c = c_ref[...]

    mask_tail = T_pad != T_total     # static: only emit tail masking if T was padded
    base = t_idx * TC                # traced scalar

    # Statically unrolled recurrence within the chunk; each step is one MXU matmul
    # (h @ Whh) plus full-vreg gate math (gate slices are 128-lane aligned).
    for s in range(TC):
        gates = gx[s * BT:(s + 1) * BT, :] + jnp.dot(
            h, whh, preferred_element_type=jnp.float32)          # (BT, 4*Hp)
        i = jax.nn.sigmoid(gates[:, 0 * Hp:1 * Hp])
        f = jax.nn.sigmoid(gates[:, 1 * Hp:2 * Hp])
        g = jnp.tanh(gates[:, 2 * Hp:3 * Hp])
        o = jax.nn.sigmoid(gates[:, 3 * Hp:4 * Hp])
        c_new = f * c + i * g
        h_new = o * jnp.tanh(c_new)
        if mask_tail:
            valid = (base + s) < T_total
            h = jnp.where(valid, h_new, h)
            c = jnp.where(valid, c_new, c)
        else:
            h, c = h_new, c_new

    h_ref[...] = h
    c_ref[...] = c

    @pl.when(t_idx == pl.num_programs(1) - 1)
    def _finalize():
        out_ref[...] = (jnp.dot(h, wlin_ref[...], preferred_element_type=jnp.float32)
                        + blin_ref[...])


# -------------------- wrapper --------------------

def _pad_gates(w, H, Hp):
    """(rows, 4H) -> (rows, 4Hp): place each PyTorch gate block (i,f,g,o) at a
    128-lane-aligned offset k*Hp so in-kernel gate slices are whole vregs."""
    if Hp == H:
        return w
    rows = w.shape[0]
    out = jnp.zeros((rows, 4 * Hp), w.dtype)
    for k in range(4):
        out = out.at[:, k * Hp:k * Hp + H].set(w[:, k * H:(k + 1) * H])
    return out


def regression_lstm_forward(x, params, num_layers, hidden, n_out, *, t_chunk=32):
    B, T, D = x.shape
    H = hidden
    Hp = ((H + 127) // 128) * 128                     # lane-pad hidden to 128

    # Batch tile: multiple of 8 sublanes, up to 128 MXU rows; pad batch to it.
    B_TILE = min(max(8, ((B + 7) // 8) * 8), 128)
    Bp = ((B + B_TILE - 1) // B_TILE) * B_TILE

    # Time chunking: x is streamed chunk-by-chunk via the grid.
    T_CHUNK = min(t_chunk, T)
    Tp = ((T + T_CHUNK - 1) // T_CHUNK) * T_CHUNK

    # time-major, padded input: (Tp, Bp, D)
    xt = jnp.transpose(x, (1, 0, 2)).astype(jnp.float32)
    xt = jnp.pad(xt, ((0, Tp - T), (0, Bp - B), (0, 0)))

    # Only layer 0 is needed: PyTorch forward uses hn[0] (first layer's final hidden).
    w_ih, w_hh, b_ih, b_hh = params["layer0"]
    wih = _pad_gates(w_ih.T.astype(jnp.float32), H, Hp)                 # (D, 4Hp)
    whh = _pad_gates(w_hh.T.astype(jnp.float32), H, Hp)                 # (H, 4Hp)
    whh = jnp.pad(whh, ((0, Hp - H), (0, 0)))                           # (Hp, 4Hp)
    b = _pad_gates((b_ih + b_hh)[None, :].astype(jnp.float32), H, Hp)   # (1, 4Hp)

    w_lin, b_lin = params["linear"]
    wlin = jnp.pad(w_lin.T.astype(jnp.float32), ((0, Hp - H), (0, 0)))  # (Hp, n_out)
    blin = b_lin[None, :].astype(jnp.float32)                           # (1, n_out)

    n_btiles = Bp // B_TILE
    n_tchunks = Tp // T_CHUNK

    kernel = functools.partial(_lstm_kernel, T, Tp)

    out = pl.pallas_call(
        kernel,
        out_shape=jax.ShapeDtypeStruct((Bp, n_out), jnp.float32),
        grid=(n_btiles, n_tchunks),
        in_specs=[
            pl.BlockSpec((T_CHUNK, B_TILE, D), lambda bi, ti: (ti, bi, 0)),  # x chunk
            pl.BlockSpec((D, 4 * Hp), lambda bi, ti: (0, 0)),                # W_ih
            pl.BlockSpec((Hp, 4 * Hp), lambda bi, ti: (0, 0)),               # W_hh
            pl.BlockSpec((1, 4 * Hp), lambda bi, ti: (0, 0)),                # bias
            pl.BlockSpec((Hp, n_out), lambda bi, ti: (0, 0)),                # W_lin
            pl.BlockSpec((1, n_out), lambda bi, ti: (0, 0)),                 # b_lin
        ],
        out_specs=pl.BlockSpec((B_TILE, n_out), lambda bi, ti: (bi, 0)),
        scratch_shapes=[
            pltpu.VMEM((B_TILE, Hp), jnp.float32),   # h carry
            pltpu.VMEM((B_TILE, Hp), jnp.float32),   # c carry
        ],
        compiler_params=pltpu.CompilerParams(
            dimension_semantics=("parallel", "arbitrary")),
    )(xt, wih, whh, b, wlin, blin)

    out = out[:B]                                    # drop batch padding
    # .flatten().reshape(-1, n_out) is an identity reshape on (B, n_out).
    return out.reshape(-1, n_out)


# -------------------- pure-JAX reference (for verification) --------------------

def reference_forward(x, params, num_layers, hidden, n_out):
    B, T, _ = x.shape
    hs = [jnp.zeros((B, hidden), jnp.float32) for _ in range(num_layers)]
    cs = [jnp.zeros((B, hidden), jnp.float32) for _ in range(num_layers)]
    for t in range(T):
        inp = x[:, t, :]
        for l in range(num_layers):
            w_ih, w_hh, b_ih, b_hh = params[f"layer{l}"]
            gates = inp @ w_ih.T + hs[l] @ w_hh.T + b_ih + b_hh
            i, f, g, o = jnp.split(gates, 4, axis=-1)
            cs[l] = jax.nn.sigmoid(f) * cs[l] + jax.nn.sigmoid(i) * jnp.tanh(g)
            hs[l] = jax.nn.sigmoid(o) * jnp.tanh(cs[l])
            inp = hs[l]
    w_lin, b_lin = params["linear"]
    out = hs[0] @ w_lin.T + b_lin                    # PyTorch uses hn[0]
    return out.reshape(-1, n_out)


# -------------------- parameter init (PyTorch-style shapes) --------------------

def init_params(key, num_sensors, hidden, num_layers, n_out):
    params = {}
    stdv = 1.0 / (hidden ** 0.5)
    for l in range(num_layers):
        in_dim = num_sensors if l == 0 else hidden
        key, k1, k2, k3, k4 = jax.random.split(key, 5)
        params[f"layer{l}"] = (
            jax.random.uniform(k1, (4 * hidden, in_dim), jnp.float32, -stdv, stdv),  # W_ih
            jax.random.uniform(k2, (4 * hidden, hidden), jnp.float32, -stdv, stdv),  # W_hh
            jax.random.uniform(k3, (4 * hidden,), jnp.float32, -stdv, stdv),         # b_ih
            jax.random.uniform(k4, (4 * hidden,), jnp.float32, -stdv, stdv),         # b_hh
        )
    key, k1, k2 = jax.random.split(key, 3)
    params["linear"] = (
        jax.random.uniform(k1, (n_out, hidden), jnp.float32, -stdv, stdv),
        jax.random.uniform(k2, (n_out,), jnp.float32, -stdv, stdv),
    )
    return params


if __name__ == "__main__":
    # Small config consistent with the module:
    #   num_sensors=4, hidden_units=32, num_layers=2, len(cfg.model.output)=2
    B, T = 2, 8
    NUM_SENSORS, HIDDEN, NUM_LAYERS, N_OUT = 4, 32, 2, 2

    key = jax.random.PRNGKey(0)
    key, kx, kp = jax.random.split(key, 3)
    x = jax.random.normal(kx, (B, T, NUM_SENSORS), dtype=jnp.float32)
    params = init_params(kp, NUM_SENSORS, HIDDEN, NUM_LAYERS, N_OUT)

    out = regression_lstm_forward(x, params, NUM_LAYERS, HIDDEN, N_OUT)
    out = jax.block_until_ready(out)

    ref = reference_forward(x, params, NUM_LAYERS, HIDDEN, N_OUT)
    assert out.shape == (B, N_OUT), out.shape
    assert jnp.allclose(out, ref, atol=1e-5, rtol=1e-5), (out, ref)

    print("KERNEL_OK")
</pallas_src>

<mosaic_0001>
module attributes {stable_mosaic.version = 11 : i64} {
  func.func @_lstm_kernel(%arg0: i32, %arg1: i32, %arg2: memref<8x8x4xf32, #tpu.memory_space<vmem>>, %arg3: memref<4x512xf32, #tpu.memory_space<vmem>>, %arg4: memref<128x512xf32, #tpu.memory_space<vmem>>, %arg5: memref<1x512xf32, #tpu.memory_space<vmem>>, %arg6: memref<128x2xf32, #tpu.memory_space<vmem>>, %arg7: memref<1x2xf32, #tpu.memory_space<vmem>>, %arg8: memref<8x2xf32, #tpu.memory_space<vmem>>, %arg9: memref<8x128xf32, #tpu.memory_space<vmem>>, %arg10: memref<8x128xf32, #tpu.memory_space<vmem>>) attributes {dimension_semantics = [#tpu.dimension_semantics<parallel>, #tpu.dimension_semantics<arbitrary>], iteration_bounds = array<i64: 1, 1>, scalar_prefetch = 0 : i64, scratch_operands = 2 : i64, tpu.core_type = #tpu.core_type<tc>, window_params = [{transform_indices = @transform_0, window_bounds = array<i64: 8, 8, 4>}, {pipeline_mode = #tpu.pipeline_mode<synchronous>, transform_indices = @transform_1, window_bounds = array<i64: 4, 512>}, {pipeline_mode = #tpu.pipeline_mode<synchronous>, transform_indices = @transform_2, window_bounds = array<i64: 128, 512>}, {pipeline_mode = #tpu.pipeline_mode<synchronous>, transform_indices = @transform_3, window_bounds = array<i64: 1, 512>}, {pipeline_mode = #tpu.pipeline_mode<synchronous>, transform_indices = @transform_4, window_bounds = array<i64: 128, 2>}, {pipeline_mode = #tpu.pipeline_mode<synchronous>, transform_indices = @transform_5, window_bounds = array<i64: 1, 2>}, {transform_indices = @transform_6, window_bounds = array<i64: 8, 2>}]} {
    %c0_i32 = arith.constant 0 : i32
    %0 = arith.cmpi eq, %arg1, %c0_i32 : i32
    %1 = arith.extui %0 : i1 to i32
    %c0_i32_0 = arith.constant 0 : i32
    %2 = arith.cmpi ne, %1, %c0_i32_0 : i32
    scf.if %2 {
      %cst_51 = arith.constant 0.000000e+00 : f32
      %242 = vector.broadcast %cst_51 : f32 to vector<8x128xf32>
      %c0_52 = arith.constant 0 : index
      %c0_53 = arith.constant 0 : index
      %243 = vector.load %arg9[%c0_52, %c0_53] : memref<8x128xf32, #tpu.memory_space<vmem>>, vector<8x128xf32>
      tpu.vector_store %arg9[%c0_52, %c0_53], %242 {strides = array<i32>} : memref<8x128xf32, #tpu.memory_space<vmem>>, vector<8x128xf32>,
      %cst_54 = arith.constant 0.000000e+00 : f32
      %244 = vector.broadcast %cst_54 : f32 to vector<8x128xf32>
      %c0_55 = arith.constant 0 : index
      %c0_56 = arith.constant 0 : index
      %245 = vector.load %arg10[%c0_55, %c0_56] : memref<8x128xf32, #tpu.memory_space<vmem>>, vector<8x128xf32>
      tpu.vector_store %arg10[%c0_55, %c0_56], %244 {strides = array<i32>} : memref<8x128xf32, #tpu.memory_space<vmem>>, vector<8x128xf32>,
    } else {
    }
    %c0 = arith.constant 0 : index
    %c0_1 = arith.constant 0 : index
    %c0_2 = arith.constant 0 : index
    %3 = vector.load %arg2[%c0, %c0_1, %c0_2] : memref<8x8x4xf32, #tpu.memory_space<vmem>>, vector<8x8x4xf32>
    %4 = vector.shape_cast %3 : vector<8x8x4xf32> to vector<64x4xf32>
    %c0_3 = arith.constant 0 : index
    %c0_4 = arith.constant 0 : index
    %5 = vector.load %arg3[%c0_3, %c0_4] : memref<4x512xf32, #tpu.memory_space<vmem>>, vector<4x512xf32>
    %cst = arith.constant dense<0.000000e+00> : vector<64x512xf32>
    %6 = tpu.matmul %4, %5, %cst {dimension_numbers = #tpu.dot_dimension_numbers<[1], [0], [0], [1], [0, 0, 1, 1], [], []>} : vector<64x4xf32>, vector<4x512xf32>, vector<64x512xf32> -> vector<64x512xf32>
    %c0_5 = arith.constant 0 : index
    %c0_6 = arith.constant 0 : index
    %7 = vector.load %arg5[%c0_5, %c0_6] : memref<1x512xf32, #tpu.memory_space<vmem>>, vector<1x512xf32>
    %8 = vector.broadcast %7 : vector<1x512xf32> to vector<64x512xf32>
    %9 = arith.addf %6, %8 : vector<64x512xf32>
    %c0_7 = arith.constant 0 : index
    %c0_8 = arith.constant 0 : index
    %10 = vector.load %arg4[%c0_7, %c0_8] : memref<128x512xf32, #tpu.memory_space<vmem>>, vector<128x512xf32>
    %c0_9 = arith.constant 0 : index
    %c0_10 = arith.constant 0 : index
    %11 = vector.load %arg9[%c0_9, %c0_10] : memref<8x128xf32, #tpu.memory_space<vmem>>, vector<8x128xf32>
    %c0_11 = arith.constant 0 : index
    %c0_12 = arith.constant 0 : index
    %12 = vector.load %arg10[%c0_11, %c0_12] : memref<8x128xf32, #tpu.memory_space<vmem>>, vector<8x128xf32>
    %13 = vector.extract_strided_slice %9 {offsets = [0, 0], sizes = [8, 512], strides = [1, 1]} : vector<64x512xf32> to vector<8x512xf32>
    %cst_13 = arith.constant dense<0.000000e+00> : vector<8x512xf32>
    %14 = tpu.matmul %11, %10, %cst_13 {dimension_numbers = #tpu.dot_dimension_numbers<[1], [0], [0], [1], [0, 0, 1, 1], [], []>} : vector<8x128xf32>, vector<128x512xf32>, vector<8x512xf32> -> vector<8x512xf32>
    %15 = arith.addf %13, %14 : vector<8x512xf32>
    %16 = vector.extract_strided_slice %15 {offsets = [0, 0], sizes = [8, 128], strides = [1, 1]} : vector<8x512xf32> to vector<8x128xf32>
    %17 = arith.negf %16 : vector<8x128xf32>
    %18 = math.exp %17 : vector<8x128xf32>
    %cst_14 = arith.constant 1.000000e+00 : f32
    %19 = vector.broadcast %cst_14 : f32 to vector<8x128xf32>
    %20 = arith.addf %19, %18 : vector<8x128xf32>
    %21 = arith.divf %19, %20 : vector<8x128xf32>
    %22 = vector.extract_strided_slice %15 {offsets = [0, 128], sizes = [8, 128], strides = [1, 1]} : vector<8x512xf32> to vector<8x128xf32>
    %23 = arith.negf %22 : vector<8x128xf32>
    %24 = math.exp %23 : vector<8x128xf32>
    %cst_15 = arith.constant 1.000000e+00 : f32
    %25 = vector.broadcast %cst_15 : f32 to vector<8x128xf32>
    %26 = arith.addf %25, %24 : vector<8x128xf32>
    %27 = arith.divf %25, %26 : vector<8x128xf32>
    %28 = vector.extract_strided_slice %15 {offsets = [0, 256], sizes = [8, 128], strides = [1, 1]} : vector<8x512xf32> to vector<8x128xf32>
    %29 = math.tanh %28 : vector<8x128xf32>
    %30 = vector.extract_strided_slice %15 {offsets = [0, 384], sizes = [8, 128], strides = [1, 1]} : vector<8x512xf32> to vector<8x128xf32>
    %31 = arith.negf %30 : vector<8x128xf32>
    %32 = math.exp %31 : vector<8x128xf32>
    %cst_16 = arith.constant 1.000000e+00 : f32
    %33 = vector.broadcast %cst_16 : f32 to vector<8x128xf32>
    %34 = arith.addf %33, %32 : vector<8x128xf32>
    %35 = arith.divf %33, %34 : vector<8x128xf32>
    %36 = arith.mulf %27, %12 : vector<8x128xf32>
    %37 = arith.mulf %21, %29 : vector<8x128xf32>
    %38 = arith.addf %36, %37 : vector<8x128xf32>
    %39 = math.tanh %38 : vector<8x128xf32>
    %40 = arith.mulf %35, %39 : vector<8x128xf32>
    %41 = vector.extract_strided_slice %9 {offsets = [8, 0], sizes = [8, 512], strides = [1, 1]} : vector<64x512xf32> to vector<8x512xf32>
    %cst_17 = arith.constant dense<0.000000e+00> : vector<8x512xf32>
    %42 = tpu.matmul %40, %10, %cst_17 {dimension_numbers = #tpu.dot_dimension_numbers<[1], [0], [0], [1], [0, 0, 1, 1], [], []>} : vector<8x128xf32>, vector<128x512xf32>, vector<8x512xf32> -> vector<8x512xf32>
    %43 = arith.addf %41, %42 : vector<8x512xf32>
    %44 = vector.extract_strided_slice %43 {offsets = [0, 0], sizes = [8, 128], strides = [1, 1]} : vector<8x512xf32> to vector<8x128xf32>
    %45 = arith.negf %44 : vector<8x128xf32>
    %46 = math.exp %45 : vector<8x128xf32>
    %cst_18 = arith.constant 1.000000e+00 : f32
    %47 = vector.broadcast %cst_18 : f32 to vector<8x128xf32>
    %48 = arith.addf %47, %46 : vector<8x128xf32>
    %49 = arith.divf %47, %48 : vector<8x128xf32>
    %50 = vector.extract_strided_slice %43 {offsets = [0, 128], sizes = [8, 128], strides = [1, 1]} : vector<8x512xf32> to vector<8x128xf32>
    %51 = arith.negf %50 : vector<8x128xf32>
    %52 = math.exp %51 : vector<8x128xf32>
    %cst_19 = arith.constant 1.000000e+00 : f32
    %53 = vector.broadcast %cst_19 : f32 to vector<8x128xf32>
    %54 = arith.addf %53, %52 : vector<8x128xf32>
    %55 = arith.divf %53, %54 : vector<8x128xf32>
    %56 = vector.extract_strided_slice %43 {offsets = [0, 256], sizes = [8, 128], strides = [1, 1]} : vector<8x512xf32> to vector<8x128xf32>
    %57 = math.tanh %56 : vector<8x128xf32>
    %58 = vector.extract_strided_slice %43 {offsets = [0, 384], sizes = [8, 128], strides = [1, 1]} : vector<8x512xf32> to vector<8x128xf32>
    %59 = arith.negf %58 : vector<8x128xf32>
    %60 = math.exp %59 : vector<8x128xf32>
    %cst_20 = arith.constant 1.000000e+00 : f32
    %61 = vector.broadcast %cst_20 : f32 to vector<8x128xf32>
    %62 = arith.addf %61, %60 : vector<8x128xf32>
    %63 = arith.divf %61, %62 : vector<8x128xf32>
    %64 = arith.mulf %55, %38 : vector<8x128xf32>
    %65 = arith.mulf %49, %57 : vector<8x128xf32>
    %66 = arith.addf %64, %65 : vector<8x128xf32>
    %67 = math.tanh %66 : vector<8x128xf32>
    %68 = arith.mulf %63, %67 : vector<8x128xf32>
    %69 = vector.extract_strided_slice %9 {offsets = [16, 0], sizes = [8, 512], strides = [1, 1]} : vector<64x512xf32> to vector<8x512xf32>
    %cst_21 = arith.constant dense<0.000000e+00> : vector<8x512xf32>
    %70 = tpu.matmul %68, %10, %cst_21 {dimension_numbers = #tpu.dot_dimension_numbers<[1], [0], [0], [1], [0, 0, 1, 1], [], []>} : vector<8x128xf32>, vector<128x512xf32>, vector<8x512xf32> -> vector<8x512xf32>
    %71 = arith.addf %69, %70 : vector<8x512xf32>
    %72 = vector.extract_strided_slice %71 {offsets = [0, 0], sizes = [8, 128], strides = [1, 1]} : vector<8x512xf32> to vector<8x128xf32>
    %73 = arith.negf %72 : vector<8x128xf32>
    %74 = math.exp %73 : vector<8x128xf32>
    %cst_22 = arith.constant 1.000000e+00 : f32
    %75 = vector.broadcast %cst_22 : f32 to vector<8x128xf32>
    %76 = arith.addf %75, %74 : vector<8x128xf32>
    %77 = arith.divf %75, %76 : vector<8x128xf32>
    %78 = vector.extract_strided_slice %71 {offsets = [0, 128], sizes = [8, 128], strides = [1, 1]} : vector<8x512xf32> to vector<8x128xf32>
    %79 = arith.negf %78 : vector<8x128xf32>
    %80 = math.exp %79 : vector<8x128xf32>
    %cst_23 = arith.constant 1.000000e+00 : f32
    %81 = vector.broadcast %cst_23 : f32 to vector<8x128xf32>
    %82 = arith.addf %81, %80 : vector<8x128xf32>
    %83 = arith.divf %81, %82 : vector<8x128xf32>
    %84 = vector.extract_strided_slice %71 {offsets = [0, 256], sizes = [8, 128], strides = [1, 1]} : vector<8x512xf32> to vector<8x128xf32>
    %85 = math.tanh %84 : vector<8x128xf32>
    %86 = vector.extract_strided_slice %71 {offsets = [0, 384], sizes = [8, 128], strides = [1, 1]} : vector<8x512xf32> to vector<8x128xf32>
    %87 = arith.negf %86 : vector<8x128xf32>
    %88 = math.exp %87 : vector<8x128xf32>
    %cst_24 = arith.constant 1.000000e+00 : f32
    %89 = vector.broadcast %cst_24 : f32 to vector<8x128xf32>
    %90 = arith.addf %89, %88 : vector<8x128xf32>
    %91 = arith.divf %89, %90 : vector<8x128xf32>
    %92 = arith.mulf %83, %66 : vector<8x128xf32>
    %93 = arith.mulf %77, %85 : vector<8x128xf32>
    %94 = arith.addf %92, %93 : vector<8x128xf32>
    %95 = math.tanh %94 : vector<8x128xf32>
    %96 = arith.mulf %91, %95 : vector<8x128xf32>
    %97 = vector.extract_strided_slice %9 {offsets = [24, 0], sizes = [8, 512], strides = [1, 1]} : vector<64x512xf32> to vector<8x512xf32>
    %cst_25 = arith.constant dense<0.000000e+00> : vector<8x512xf32>
    %98 = tpu.matmul %96, %10, %cst_25 {dimension_numbers = #tpu.dot_dimension_numbers<[1], [0], [0], [1], [0, 0, 1, 1], [], []>} : vector<8x128xf32>, vector<128x512xf32>, vector<8x512xf32> -> vector<8x512xf32>
    %99 = arith.addf %97, %98 : vector<8x512xf32>
    %100 = vector.extract_strided_slice %99 {offsets = [0, 0], sizes = [8, 128], strides = [1, 1]} : vector<8x512xf32> to vector<8x128xf32>
    %101 = arith.negf %100 : vector<8x128xf32>
    %102 = math.exp %101 : vector<8x128xf32>
    %cst_26 = arith.constant 1.000000e+00 : f32
    %103 = vector.broadcast %cst_26 : f32 to vector<8x128xf32>
    %104 = arith.addf %103, %102 : vector<8x128xf32>
    %105 = arith.divf %103, %104 : vector<8x128xf32>
    %106 = vector.extract_strided_slice %99 {offsets = [0, 128], sizes = [8, 128], strides = [1, 1]} : vector<8x512xf32> to vector<8x128xf32>
    %107 = arith.negf %106 : vector<8x128xf32>
    %108 = math.exp %107 : vector<8x128xf32>
    %cst_27 = arith.constant 1.000000e+00 : f32
    %109 = vector.broadcast %cst_27 : f32 to vector<8x128xf32>
    %110 = arith.addf %109, %108 : vector<8x128xf32>
    %111 = arith.divf %109, %110 : vector<8x128xf32>
    %112 = vector.extract_strided_slice %99 {offsets = [0, 256], sizes = [8, 128], strides = [1, 1]} : vector<8x512xf32> to vector<8x128xf32>
    %113 = math.tanh %112 : vector<8x128xf32>
    %114 = vector.extract_strided_slice %99 {offsets = [0, 384], sizes = [8, 128], strides = [1, 1]} : vector<8x512xf32> to vector<8x128xf32>
    %115 = arith.negf %114 : vector<8x128xf32>
    %116 = math.exp %115 : vector<8x128xf32>
    %cst_28 = arith.constant 1.000000e+00 : f32
    %117 = vector.broadcast %cst_28 : f32 to vector<8x128xf32>
    %118 = arith.addf %117, %116 : vector<8x128xf32>
    %119 = arith.divf %117, %118 : vector<8x128xf32>
    %120 = arith.mulf %111, %94 : vector<8x128xf32>
    %121 = arith.mulf %105, %113 : vector<8x128xf32>
    %122 = arith.addf %120, %121 : vector<8x128xf32>
    %123 = math.tanh %122 : vector<8x128xf32>
    %124 = arith.mulf %119, %123 : vector<8x128xf32>
    %125 = vector.extract_strided_slice %9 {offsets = [32, 0], sizes = [8, 512], strides = [1, 1]} : vector<64x512xf32> to vector<8x512xf32>
    %cst_29 = arith.constant dense<0.000000e+00> : vector<8x512xf32>
    %126 = tpu.matmul %124, %10, %cst_29 {dimension_numbers = #tpu.dot_dimension_numbers<[1], [0], [0], [1], [0, 0, 1, 1], [], []>} : vector<8x128xf32>, vector<128x512xf32>, vector<8x512xf32> -> vector<8x512xf32>
    %127 = arith.addf %125, %126 : vector<8x512xf32>
    %128 = vector.extract_strided_slice %127 {offsets = [0, 0], sizes = [8, 128], strides = [1, 1]} : vector<8x512xf32> to vector<8x128xf32>
    %129 = arith.negf %128 : vector<8x128xf32>
    %130 = math.exp %129 : vector<8x128xf32>
    %cst_30 = arith.constant 1.000000e+00 : f32
    %131 = vector.broadcast %cst_30 : f32 to vector<8x128xf32>
    %132 = arith.addf %131, %130 : vector<8x128xf32>
    %133 = arith.divf %131, %132 : vector<8x128xf32>
    %134 = vector.extract_strided_slice %127 {offsets = [0, 128], sizes = [8, 128], strides = [1, 1]} : vector<8x512xf32> to vector<8x128xf32>
    %135 = arith.negf %134 : vector<8x128xf32>
    %136 = math.exp %135 : vector<8x128xf32>
    %cst_31 = arith.constant 1.000000e+00 : f32
    %137 = vector.broadcast %cst_31 : f32 to vector<8x128xf32>
    %138 = arith.addf %137, %136 : vector<8x128xf32>
    %139 = arith.divf %137, %138 : vector<8x128xf32>
    %140 = vector.extract_strided_slice %127 {offsets = [0, 256], sizes = [8, 128], strides = [1, 1]} : vector<8x512xf32> to vector<8x128xf32>
    %141 = math.tanh %140 : vector<8x128xf32>
    %142 = vector.extract_strided_slice %127 {offsets = [0, 384], sizes = [8, 128], strides = [1, 1]} : vector<8x512xf32> to vector<8x128xf32>
    %143 = arith.negf %142 : vector<8x128xf32>
    %144 = math.exp %143 : vector<8x128xf32>
    %cst_32 = arith.constant 1.000000e+00 : f32
    %145 = vector.broadcast %cst_32 : f32 to vector<8x128xf32>
    %146 = arith.addf %145, %144 : vector<8x128xf32>
    %147 = arith.divf %145, %146 : vector<8x128xf32>
    %148 = arith.mulf %139, %122 : vector<8x128xf32>
    %149 = arith.mulf %133, %141 : vector<8x128xf32>
    %150 = arith.addf %148, %149 : vector<8x128xf32>
    %151 = math.tanh %150 : vector<8x128xf32>
    %152 = arith.mulf %147, %151 : vector<8x128xf32>
    %153 = vector.extract_strided_slice %9 {offsets = [40, 0], sizes = [8, 512], strides = [1, 1]} : vector<64x512xf32> to vector<8x512xf32>
    %cst_33 = arith.constant dense<0.000000e+00> : vector<8x512xf32>
    %154 = tpu.matmul %152, %10, %cst_33 {dimension_numbers = #tpu.dot_dimension_numbers<[1], [0], [0], [1], [0, 0, 1, 1], [], []>} : vector<8x128xf32>, vector<128x512xf32>, vector<8x512xf32> -> vector<8x512xf32>
    %155 = arith.addf %153, %154 : vector<8x512xf32>
    %156 = vector.extract_strided_slice %155 {offsets = [0, 0], sizes = [8, 128], strides = [1, 1]} : vector<8x512xf32> to vector<8x128xf32>
    %157 = arith.negf %156 : vector<8x128xf32>
    %158 = math.exp %157 : vector<8x128xf32>
    %cst_34 = arith.constant 1.000000e+00 : f32
    %159 = vector.broadcast %cst_34 : f32 to vector<8x128xf32>
    %160 = arith.addf %159, %158 : vector<8x128xf32>
    %161 = arith.divf %159, %160 : vector<8x128xf32>
    %162 = vector.extract_strided_slice %155 {offsets = [0, 128], sizes = [8, 128], strides = [1, 1]} : vector<8x512xf32> to vector<8x128xf32>
    %163 = arith.negf %162 : vector<8x128xf32>
    %164 = math.exp %163 : vector<8x128xf32>
    %cst_35 = arith.constant 1.000000e+00 : f32
    %165 = vector.broadcast %cst_35 : f32 to vector<8x128xf32>
    %166 = arith.addf %165, %164 : vector<8x128xf32>
    %167 = arith.divf %165, %166 : vector<8x128xf32>
    %168 = vector.extract_strided_slice %155 {offsets = [0, 256], sizes = [8, 128], strides = [1, 1]} : vector<8x512xf32> to vector<8x128xf32>
    %169 = math.tanh %168 : vector<8x128xf32>
    %170 = vector.extract_strided_slice %155 {offsets = [0, 384], sizes = [8, 128], strides = [1, 1]} : vector<8x512xf32> to vector<8x128xf32>
    %171 = arith.negf %170 : vector<8x128xf32>
    %172 = math.exp %171 : vector<8x128xf32>
    %cst_36 = arith.constant 1.000000e+00 : f32
    %173 = vector.broadcast %cst_36 : f32 to vector<8x128xf32>
    %174 = arith.addf %173, %172 : vector<8x128xf32>
    %175 = arith.divf %173, %174 : vector<8x128xf32>
    %176 = arith.mulf %167, %150 : vector<8x128xf32>
    %177 = arith.mulf %161, %169 : vector<8x128xf32>
    %178 = arith.addf %176, %177 : vector<8x128xf32>
    %179 = math.tanh %178 : vector<8x128xf32>
    %180 = arith.mulf %175, %179 : vector<8x128xf32>
    %181 = vector.extract_strided_slice %9 {offsets = [48, 0], sizes = [8, 512], strides = [1, 1]} : vector<64x512xf32> to vector<8x512xf32>
    %cst_37 = arith.constant dense<0.000000e+00> : vector<8x512xf32>
    %182 = tpu.matmul %180, %10, %cst_37 {dimension_numbers = #tpu.dot_dimension_numbers<[1], [0], [0], [1], [0, 0, 1, 1], [], []>} : vector<8x128xf32>, vector<128x512xf32>, vector<8x512xf32> -> vector<8x512xf32>
    %183 = arith.addf %181, %182 : vector<8x512xf32>
    %184 = vector.extract_strided_slice %183 {offsets = [0, 0], sizes = [8, 128], strides = [1, 1]} : vector<8x512xf32> to vector<8x128xf32>
    %185 = arith.negf %184 : vector<8x128xf32>
    %186 = math.exp %185 : vector<8x128xf32>
    %cst_38 = arith.constant 1.000000e+00 : f32
    %187 = vector.broadcast %cst_38 : f32 to vector<8x128xf32>
    %188 = arith.addf %187, %186 : vector<8x128xf32>
    %189 = arith.divf %187, %188 : vector<8x128xf32>
    %190 = vector.extract_strided_slice %183 {offsets = [0, 128], sizes = [8, 128], strides = [1, 1]} : vector<8x512xf32> to vector<8x128xf32>
    %191 = arith.negf %190 : vector<8x128xf32>
    %192 = math.exp %191 : vector<8x128xf32>
    %cst_39 = arith.constant 1.000000e+00 : f32
    %193 = vector.broadcast %cst_39 : f32 to vector<8x128xf32>
    %194 = arith.addf %193, %192 : vector<8x128xf32>
    %195 = arith.divf %193, %194 : vector<8x128xf32>
    %196 = vector.extract_strided_slice %183 {offsets = [0, 256], sizes = [8, 128], strides = [1, 1]} : vector<8x512xf32> to vector<8x128xf32>
    %197 = math.tanh %196 : vector<8x128xf32>
    %198 = vector.extract_strided_slice %183 {offsets = [0, 384], sizes = [8, 128], strides = [1, 1]} : vector<8x512xf32> to vector<8x128xf32>
    %199 = arith.negf %198 : vector<8x128xf32>
    %200 = math.exp %199 : vector<8x128xf32>
    %cst_40 = arith.constant 1.000000e+00 : f32
    %201 = vector.broadcast %cst_40 : f32 to vector<8x128xf32>
    %202 = arith.addf %201, %200 : vector<8x128xf32>
    %203 = arith.divf %201, %202 : vector<8x128xf32>
    %204 = arith.mulf %195, %178 : vector<8x128xf32>
    %205 = arith.mulf %189, %197 : vector<8x128xf32>
    %206 = arith.addf %204, %205 : vector<8x128xf32>
    %207 = math.tanh %206 : vector<8x128xf32>
    %208 = arith.mulf %203, %207 : vector<8x128xf32>
    %209 = vector.extract_strided_slice %9 {offsets = [56, 0], sizes = [8, 512], strides = [1, 1]} : vector<64x512xf32> to vector<8x512xf32>
    %cst_41 = arith.constant dense<0.000000e+00> : vector<8x512xf32>
    %210 = tpu.matmul %208, %10, %cst_41 {dimension_numbers = #tpu.dot_dimension_numbers<[1], [0], [0], [1], [0, 0, 1, 1], [], []>} : vector<8x128xf32>, vector<128x512xf32>, vector<8x512xf32> -> vector<8x512xf32>
    %211 = arith.addf %209, %210 : vector<8x512xf32>
    %212 = vector.extract_strided_slice %211 {offsets = [0, 0], sizes = [8, 128], strides = [1, 1]} : vector<8x512xf32> to vector<8x128xf32>
    %213 = arith.negf %212 : vector<8x128xf32>
    %214 = math.exp %213 : vector<8x128xf32>
    %cst_42 = arith.constant 1.000000e+00 : f32
    %215 = vector.broadcast %cst_42 : f32 to vector<8x128xf32>
    %216 = arith.addf %215, %214 : vector<8x128xf32>
    %217 = arith.divf %215, %216 : vector<8x128xf32>
    %218 = vector.extract_strided_slice %211 {offsets = [0, 128], sizes = [8, 128], strides = [1, 1]} : vector<8x512xf32> to vector<8x128xf32>
    %219 = arith.negf %218 : vector<8x128xf32>
    %220 = math.exp %219 : vector<8x128xf32>
    %cst_43 = arith.constant 1.000000e+00 : f32
    %221 = vector.broadcast %cst_43 : f32 to vector<8x128xf32>
    %222 = arith.addf %221, %220 : vector<8x128xf32>
    %223 = arith.divf %221, %222 : vector<8x128xf32>
    %224 = vector.extract_strided_slice %211 {offsets = [0, 256], sizes = [8, 128], strides = [1, 1]} : vector<8x512xf32> to vector<8x128xf32>
    %225 = math.tanh %224 : vector<8x128xf32>
    %226 = vector.extract_strided_slice %211 {offsets = [0, 384], sizes = [8, 128], strides = [1, 1]} : vector<8x512xf32> to vector<8x128xf32>
    %227 = arith.negf %226 : vector<8x128xf32>
    %228 = math.exp %227 : vector<8x128xf32>
    %cst_44 = arith.constant 1.000000e+00 : f32
    %229 = vector.broadcast %cst_44 : f32 to vector<8x128xf32>
    %230 = arith.addf %229, %228 : vector<8x128xf32>
    %231 = arith.divf %229, %230 : vector<8x128xf32>
    %232 = arith.mulf %223, %206 : vector<8x128xf32>
    %233 = arith.mulf %217, %225 : vector<8x128xf32>
    %234 = arith.addf %232, %233 : vector<8x128xf32>
    %235 = math.tanh %234 : vector<8x128xf32>
    %236 = arith.mulf %231, %235 : vector<8x128xf32>
    %c0_45 = arith.constant 0 : index
    %c0_46 = arith.constant 0 : index
    %237 = vector.load %arg9[%c0_45, %c0_46] : memref<8x128xf32, #tpu.memory_space<vmem>>, vector<8x128xf32>
    tpu.vector_store %arg9[%c0_45, %c0_46], %236 {strides = array<i32>} : memref<8x128xf32, #tpu.memory_space<vmem>>, vector<8x128xf32>,
    %c0_47 = arith.constant 0 : index
    %c0_48 = arith.constant 0 : index
    %238 = vector.load %arg10[%c0_47, %c0_48] : memref<8x128xf32, #tpu.memory_space<vmem>>, vector<8x128xf32>
    tpu.vector_store %arg10[%c0_47, %c0_48], %234 {strides = array<i32>} : memref<8x128xf32, #tpu.memory_space<vmem>>, vector<8x128xf32>,
    %c0_i32_49 = arith.constant 0 : i32
    %239 = arith.cmpi eq, %arg1, %c0_i32_49 : i32
    %240 = arith.extui %239 : i1 to i32
    %c0_i32_50 = arith.constant 0 : i32
    %241 = arith.cmpi ne, %240, %c0_i32_50 : i32
    scf.if %241 {
      %c0_51 = arith.constant 0 : index
      %c0_52 = arith.constant 0 : index
      %242 = vector.load %arg6[%c0_51, %c0_52] : memref<128x2xf32, #tpu.memory_space<vmem>>, vector<128x2xf32>
      %cst_53 = arith.constant dense<0.000000e+00> : vector<8x2xf32>
      %243 = tpu.matmul %236, %242, %cst_53 {dimension_numbers = #tpu.dot_dimension_numbers<[1], [0], [0], [1], [0, 0, 1, 1], [], []>} : vector<8x128xf32>, vector<128x2xf32>, vector<8x2xf32> -> vector<8x2xf32>
      %c0_54 = arith.constant 0 : index
      %c0_55 = arith.constant 0 : index
      %244 = vector.load %arg7[%c0_54, %c0_55] : memref<1x2xf32, #tpu.memory_space<vmem>>, vector<1x2xf32>
      %245 = vector.broadcast %244 : vector<1x2xf32> to vector<8x2xf32>
      %246 = arith.addf %243, %245 : vector<8x2xf32>
      %c0_56 = arith.constant 0 : index
      %c0_57 = arith.constant 0 : index
      %247 = vector.load %arg8[%c0_56, %c0_57] : memref<8x2xf32, #tpu.memory_space<vmem>>, vector<8x2xf32>
      tpu.vector_store %arg8[%c0_56, %c0_57], %246 {strides = array<i32>} : memref<8x2xf32, #tpu.memory_space<vmem>>, vector<8x2xf32>,
    } else {
    }
    return
  }
  func.func @transform_0(%arg0: i32, %arg1: i32) -> (i32, i32, i32) {
    %c0_i32 = arith.constant 0 : i32
    %c0_i32_0 = arith.constant 0 : i32
    return %arg1, %arg0, %c0_i32 : i32, i32, i32
  }
  func.func @transform_1(%arg0: i32, %arg1: i32) -> (i32, i32) {
    %c0_i32 = arith.constant 0 : i32
    %c0_i32_0 = arith.constant 0 : i32
    %c0_i32_1 = arith.constant 0 : i32
    return %c0_i32, %c0_i32_0 : i32, i32
  }
  func.func @transform_2(%arg0: i32, %arg1: i32) -> (i32, i32) {
    %c0_i32 = arith.constant 0 : i32
    %c0_i32_0 = arith.constant 0 : i32
    %c0_i32_1 = arith.constant 0 : i32
    return %c0_i32, %c0_i32_0 : i32, i32
  }
  func.func @transform_3(%arg0: i32, %arg1: i32) -> (i32, i32) {
    %c0_i32 = arith.constant 0 : i32
    %c0_i32_0 = arith.constant 0 : i32
    %c0_i32_1 = arith.constant 0 : i32
    return %c0_i32, %c0_i32_0 : i32, i32
  }
  func.func @transform_4(%arg0: i32, %arg1: i32) -> (i32, i32) {
    %c0_i32 = arith.constant 0 : i32
    %c0_i32_0 = arith.constant 0 : i32
    %c0_i32_1 = arith.constant 0 : i32
    return %c0_i32, %c0_i32_0 : i32, i32
  }
  func.func @transform_5(%arg0: i32, %arg1: i32) -> (i32, i32) {
    %c0_i32 = arith.constant 0 : i32
    %c0_i32_0 = arith.constant 0 : i32
    %c0_i32_1 = arith.constant 0 : i32
    return %c0_i32, %c0_i32_0 : i32, i32
  }
  func.func @transform_6(%arg0: i32, %arg1: i32) -> (i32, i32) {
    %c0_i32 = arith.constant 0 : i32
    %c0_i32_0 = arith.constant 0 : i32
    return %arg0, %c0_i32 : i32, i32
  }
}

</mosaic_0001>

<llo_original>
// kernel: tpu_custom_call.1
$region0: #{tpu_custom_call.1}
  #allocation0 [shape = 'u32[]', space=smem, size = 0x4, offset = 0x4, fixed_abs, tag = 'smem constant byte address 0x4 - core index']
  #allocation1 [shape = 'u32[72,128]{1,0:T(1,128)}', space=vmem, size = 0x9000, scoped, tag = 'internal scratch']
  #allocation2 [shape = 'f32[8,128]{1,0:T(8,128)}', space=vmem, size = 0x1000, scoped, tag = 'scratch operand']
  #allocation3 [shape = 'f32[8,128]{1,0:T(8,128)}', space=vmem, size = 0x1000, scoped, tag = 'scratch operand']
  %s0 = inlined_call_operand.vmem [shape: f32[8,8,4], index: 0, kind: input, shape index: {}]
  %s1 = inlined_call_operand.vmem [shape: f32[4,512], index: 1, kind: input, shape index: {}]
  %s2 = inlined_call_operand.hbm [shape: f32[128,512], index: 2, kind: input, shape index: {}]
  %s3 = inlined_call_operand.vmem [shape: f32[1,512], index: 3, kind: input, shape index: {}]
  %s4 = inlined_call_operand.vmem [shape: f32[128,2], index: 4, kind: input, shape index: {}]
  %s5 = inlined_call_operand.vmem [shape: f32[1,2], index: 5, kind: input, shape index: {}]
  %s6 = inlined_call_operand.vmem [shape: f32[8,2], index: 6, kind: output, shape index: {}]
  %s7 = sld [smem:[#allocation0]]
  $region46: #{tpu_custom_call.1} parent=0
    _
  %s9 = ssub.s32 1, %s7
  %s10 = scalar_select 0, %s9, %s7
  $region1: #{tpu_custom_call.1} parent=0
    #allocation4 [shape = 'u8[262144]{0}', space=vmem, size = 0x40000, scoped, tag = 'input window, operand 2, single buffered']
    #allocation5 [shape = 's32[1]{0}', space=sflag, size = 0x4, scoped, tag = 'scoped memory for tpu_custom_call.1']
    %11 = vsyncpa [#allocation5], 0
    // Predicated region
    $region2: #{tpu_custom_call.1} parent=1 // pred_check
      _
    $region3: #{tpu_custom_call.1} parent=1 // pred_check_branch
      %13 = sbr.rel (0) target = $region5
    $region4: #{tpu_custom_call.1} parent=1 // pred_region
      _
    $region5: #{tpu_custom_call.1} parent=1 // pred_fallthru
      _
    // Predicated region
    $region6: #{tpu_custom_call.1} parent=1 // pred_check
      _
    $region7: #{tpu_custom_call.1} parent=1 // pred_check_branch
      %15 = sbr.rel (0) target = $region9
    $region8: #{tpu_custom_call.1} parent=1 // pred_region
      _
    $region9: #{tpu_custom_call.1} parent=1 // pred_fallthru
      _
    // Predicated region
    $region10: #{tpu_custom_call.1} parent=1 // pred_check
      _
    $region11: #{tpu_custom_call.1} parent=1 // pred_check_branch
      %17 = sbr.rel (0) target = $region13
    $region12: #{tpu_custom_call.1} parent=1 // pred_region
      %19 = vsyncadd [#allocation5], 0
      %s20 = sshll.u32 %s2, 4
      %s21 = int_to_ptr.hbm [resolvable:$true] %s20
      %s22 = sshll.u32 [#allocation4], 4
      %s23 = int_to_ptr.vmem [resolvable:$true] %s22
      %28 = dma.hbm_to_vmem [thread:$0]  %s21, 8192, %s23, [#allocation5], 512, 512, 32
    $region13: #{tpu_custom_call.1} parent=1 // pred_fallthru
      _
    // Predicated region
    $region14: #{tpu_custom_call.1} parent=1 // pred_check
      _
    $region15: #{tpu_custom_call.1} parent=1 // pred_check_branch
      %30 = sbr.rel (0) target = $region17
    $region16: #{tpu_custom_call.1} parent=1 // pred_region
      _
    $region17: #{tpu_custom_call.1} parent=1 // pred_fallthru
      _
    // Predicated region
    $region18: #{tpu_custom_call.1} parent=1 // pred_check
      _
    $region19: #{tpu_custom_call.1} parent=1 // pred_check_branch
      %32 = sbr.rel (0) target = $region21
    $region20: #{tpu_custom_call.1} parent=1 // pred_region
      _
    $region21: #{tpu_custom_call.1} parent=1 // pred_fallthru
      _
    // Predicated region
    $region22: #{tpu_custom_call.1} parent=1 // pred_check
      _
    $region23: #{tpu_custom_call.1} parent=1 // pred_check_branch
      %34 = sbr.rel (0) target = $region25
    $region24: #{tpu_custom_call.1} parent=1 // pred_region
      _
    $region25: #{tpu_custom_call.1} parent=1 // pred_fallthru
      _
    // Predicated region
    $region26: #{tpu_custom_call.1} parent=1 // pred_check
      _
    $region27: #{tpu_custom_call.1} parent=1 // pred_check_branch
      %36 = sbr.rel (0) target = $region29
    $region28: #{tpu_custom_call.1} parent=1 // pred_region
      %38 = dma.done [#allocation5], 8192
    $region29: #{tpu_custom_call.1} parent=1 // pred_fallthru
      _
    %p39 = scmp.eq.s32.totalorder 0, 0
    // Predicated region
    $region30: #{tpu_custom_call.1} parent=1 // pred_check
      %p40 = pneg %p39
    $region31: #{tpu_custom_call.1} parent=1 // pred_check_branch
      %42 = sbr.rel (%p40) target = $region33
    $region32: #{tpu_custom_call.1} parent=1 // pred_region
      %43 = vst [vmem:[#allocation2] sm:$0xff] 0.0
      %44 = vst [vmem:[#allocation3] sm:$0xff] 0.0
    $region33: #{tpu_custom_call.1} parent=1 // pred_fallthru
      _
    %v45 = vld [vmem:[%s0] sm:$0xff]
    %v46 = vld [vmem:[%s0 + $0x8] sm:$0xff]
    %v47 = vld [vmem:[%s0 + $0x10] sm:$0xff]
    %v48 = vld [vmem:[%s0 + $0x18] sm:$0xff]
    %v49 = vld [vmem:[%s0 + $0x20] sm:$0xff]
    %v50 = vld [vmem:[%s0 + $0x28] sm:$0xff]
    %v51 = vld [vmem:[%s0 + $0x30] sm:$0xff]
    %v52 = vld [vmem:[%s0 + $0x38] sm:$0xff]
    %v53 = vld [vmem:[%s1] sm:$0xff]
    %v54 = vld [vmem:[%s1 + $0x8] sm:$0xff]
    %v55 = vld [vmem:[%s3] sm:$0xf]
    %v57 = vperm.slane %v55, 0
    %v58 = vperm.slane %v55, 1
    %v59 = vperm.slane %v55, 2
    %v60 = vperm.slane %v55, 3
    %67 = vst [vmem:[#allocation1] ss:$2 sm:$0xff] %v53
    %s68 = scalar_lea.vmem [#allocation1], 16
    %69 = vst [vmem:[%s68] ss:$2 sm:$0xff] %v54
    %v70 = vld.sshfl [vmem:[#allocation1] sm:$0xff pattern:$0x75316420]
    %v71 = vld.sshfl [vmem:[#allocation1 + $0x8] sm:$0xff pattern:$0x75316420]
    %v72 = vld.sshfl [vmem:[#allocation1 + $0x10] sm:$0xff pattern:$0x75316420]
    %v73 = vld.sshfl [vmem:[#allocation1 + $0x18] sm:$0xff pattern:$0x75316420]
    %vm74 = vcmask 31744
    %v76 = vsel %vm74, %v45, 0
    %v79 = vsel %vm74, %v46, 0
    %v82 = vsel %vm74, %v47, 0
    %v85 = vsel %vm74, %v48, 0
    %v88 = vsel %vm74, %v49, 0
    %v91 = vsel %vm74, %v50, 0
    %v94 = vsel %vm74, %v51, 0
    %v97 = vsel %vm74, %v52, 0
    %vm99 = vcmask 1043456
    %v100 = vsel %vm99, %v70, 0
    %v102 = vsel %vm99, %v71, 0
    %v104 = vsel %vm99, %v72, 0
    %v106 = vsel %vm99, %v73, 0
    %108 = vmatpush.msra.mxu0 0.0
    %109 = vmatpush.msra.mxu0 0.0
    %110 = vmatpush.msra.mxu0 0.0
    %111 = vmatpush.msra.mxu0 0.0
    %112 = vmatpush.msra.mxu0 0.0
    %113 = vmatpush.msra.mxu0 0.0
    %114 = vmatpush.msra.mxu0 0.0
    %115 = vmatpush.msra.mxu0 0.0
    %116 = vmatpush.msra.mxu0 0.0
    %117 = vmatpush.msra.mxu0 0.0
    %118 = vmatpush.msra.mxu0 0.0
    %119 = vmatpush.msra.mxu0 0.0
    %120 = vmatpush.msra.mxu0 0.0
    %121 = vmatpush.msra.mxu0 0.0
    %122 = vmatpush.msra.mxu0 0.0
    %123 = vmatpush.msra.mxu0 %v100
    %124 = vmatmul.f32.gmra.mxu0 %v76
    %v125 = vpop.f32.mrf.mxu0
    %v126 = vadd.f32 %v57, %v125
    %127 = vmatmul.f32.gmra.mxu0 %v79
    %v128 = vpop.f32.mrf.mxu0
    %v129 = vadd.f32 %v57, %v128
    %130 = vmatmul.f32.gmra.mxu0 %v82
    %v131 = vpop.f32.mrf.mxu0
    %v132 = vadd.f32 %v57, %v131
    %133 = vmatmul.f32.gmra.mxu0 %v85
    %v134 = vpop.f32.mrf.mxu0
    %v135 = vadd.f32 %v57, %v134
    %136 = vmatmul.f32.gmra.mxu0 %v88
    %v137 = vpop.f32.mrf.mxu0
    %v138 = vadd.f32 %v57, %v137
    %139 = vmatmul.f32.gmra.mxu0 %v91
    %v140 = vpop.f32.mrf.mxu0
    %v141 = vadd.f32 %v57, %v140
    %142 = vmatmul.f32.gmra.mxu0 %v94
    %v143 = vpop.f32.mrf.mxu0
    %v144 = vadd.f32 %v57, %v143
    %145 = vmatmul.f32.gmra.mxu0 %v97
    %v146 = vpop.f32.mrf.mxu0
    %v147 = vadd.f32 %v57, %v146
    %148 = vdwg.mxu0
    %149 = vmatpush.msra.mxu0 0.0
    %150 = vmatpush.msra.mxu0 0.0
    %151 = vmatpush.msra.mxu0 0.0
    %152 = vmatpush.msra.mxu0 0.0
    %153 = vmatpush.msra.mxu0 0.0
    %154 = vmatpush.msra.mxu0 0.0
    %155 = vmatpush.msra.mxu0 0.0
    %156 = vmatpush.msra.mxu0 0.0
    %157 = vmatpush.msra.mxu0 0.0
    %158 = vmatpush.msra.mxu0 0.0
    %159 = vmatpush.msra.mxu0 0.0
    %160 = vmatpush.msra.mxu0 0.0
    %161 = vmatpush.msra.mxu0 0.0
    %162 = vmatpush.msra.mxu0 0.0
    %163 = vmatpush.msra.mxu0 0.0
    %164 = vmatpush.msra.mxu0 %v102
    %165 = vmatmul.f32.gmra.mxu0 %v76
    %v166 = vpop.f32.mrf.mxu0
    %v167 = vadd.f32 %v58, %v166
    %168 = vmatmul.f32.gmra.mxu0 %v79
    %v169 = vpop.f32.mrf.mxu0
    %v170 = vadd.f32 %v58, %v169
    %171 = vmatmul.f32.gmra.mxu0 %v82
    %v172 = vpop.f32.mrf.mxu0
    %v173 = vadd.f32 %v58, %v172
    %174 = vmatmul.f32.gmra.mxu0 %v85
    %v175 = vpop.f32.mrf.mxu0
    %v176 = vadd.f32 %v58, %v175
    %177 = vmatmul.f32.gmra.mxu0 %v88
    %v178 = vpop.f32.mrf.mxu0
    %v179 = vadd.f32 %v58, %v178
    %180 = vmatmul.f32.gmra.mxu0 %v91
    %v181 = vpop.f32.mrf.mxu0
    %v182 = vadd.f32 %v58, %v181
    %183 = vmatmul.f32.gmra.mxu0 %v94
    %v184 = vpop.f32.mrf.mxu0
    %v185 = vadd.f32 %v58, %v184
    %186 = vmatmul.f32.gmra.mxu0 %v97
    %v187 = vpop.f32.mrf.mxu0
    %v188 = vadd.f32 %v58, %v187
    %189 = vdwg.mxu0
    %190 = vmatpush.msra.mxu0 0.0
    %191 = vmatpush.msra.mxu0 0.0
    %192 = vmatpush.msra.mxu0 0.0
    %193 = vmatpush.msra.mxu0 0.0
    %194 = vmatpush.msra.mxu0 0.0
    %195 = vmatpush.msra.mxu0 0.0
    %196 = vmatpush.msra.mxu0 0.0
    %197 = vmatpush.msra.mxu0 0.0
    %198 = vmatpush.msra.mxu0 0.0
    %199 = vmatpush.msra.mxu0 0.0
    %200 = vmatpush.msra.mxu0 0.0
    %201 = vmatpush.msra.mxu0 0.0
    %202 = vmatpush.msra.mxu0 0.0
    %203 = vmatpush.msra.mxu0 0.0
    %204 = vmatpush.msra.mxu0 0.0
    %205 = vmatpush.msra.mxu0 %v104
    %206 = vmatmul.f32.gmra.mxu0 %v76
    %v207 = vpop.f32.mrf.mxu0
    %v208 = vadd.f32 %v59, %v207
    %209 = vmatmul.f32.gmra.mxu0 %v79
    %v210 = vpop.f32.mrf.mxu0
    %v211 = vadd.f32 %v59, %v210
    %212 = vmatmul.f32.gmra.mxu0 %v82
    %v213 = vpop.f32.mrf.mxu0
    %v214 = vadd.f32 %v59, %v213
    %215 = vmatmul.f32.gmra.mxu0 %v85
    %v216 = vpop.f32.mrf.mxu0
    %v217 = vadd.f32 %v59, %v216
    %218 = vmatmul.f32.gmra.mxu0 %v88
    %v219 = vpop.f32.mrf.mxu0
    %v220 = vadd.f32 %v59, %v219
    %221 = vmatmul.f32.gmra.mxu0 %v91
    %v222 = vpop.f32.mrf.mxu0
    %v223 = vadd.f32 %v59, %v222
    %224 = vmatmul.f32.gmra.mxu0 %v94
    %v225 = vpop.f32.mrf.mxu0
    %v226 = vadd.f32 %v59, %v225
    %227 = vmatmul.f32.gmra.mxu0 %v97
    %v228 = vpop.f32.mrf.mxu0
    %v229 = vadd.f32 %v59, %v228
    %230 = vdwg.mxu0
    %231 = vmatpush.msra.mxu0 0.0
    %232 = vmatpush.msra.mxu0 0.0
    %233 = vmatpush.msra.mxu0 0.0
    %234 = vmatpush.msra.mxu0 0.0
    %235 = vmatpush.msra.mxu0 0.0
    %236 = vmatpush.msra.mxu0 0.0
    %237 = vmatpush.msra.mxu0 0.0
    %238 = vmatpush.msra.mxu0 0.0
    %239 = vmatpush.msra.mxu0 0.0
    %240 = vmatpush.msra.mxu0 0.0
    %241 = vmatpush.msra.mxu0 0.0
    %242 = vmatpush.msra.mxu0 0.0
    %243 = vmatpush.msra.mxu0 0.0
    %244 = vmatpush.msra.mxu0 0.0
    %245 = vmatpush.msra.mxu0 0.0
    %246 = vmatpush.msra.mxu0 %v106
    %247 = vmatmul.f32.gmra.mxu0 %v76
    %v248 = vpop.f32.mrf.mxu0
    %v249 = vadd.f32 %v60, %v248
    %250 = vmatmul.f32.gmra.mxu0 %v79
    %v251 = vpop.f32.mrf.mxu0
    %v252 = vadd.f32 %v60, %v251
    %253 = vmatmul.f32.gmra.mxu0 %v82
    %v254 = vpop.f32.mrf.mxu0
    %v255 = vadd.f32 %v60, %v254
    %256 = vmatmul.f32.gmra.mxu0 %v85
    %v257 = vpop.f32.mrf.mxu0
    %v258 = vadd.f32 %v60, %v257
    %259 = vmatmul.f32.gmra.mxu0 %v88
    %v260 = vpop.f32.mrf.mxu0
    %v261 = vadd.f32 %v60, %v260
    %262 = vmatmul.f32.gmra.mxu0 %v91
    %v263 = vpop.f32.mrf.mxu0
    %v264 = vadd.f32 %v60, %v263
    %265 = vmatmul.f32.gmra.mxu0 %v94
    %v266 = vpop.f32.mrf.mxu0
    %v267 = vadd.f32 %v60, %v266
    %268 = vmatmul.f32.gmra.mxu0 %v97
    %v269 = vpop.f32.mrf.mxu0
    %v270 = vadd.f32 %v60, %v269
    %271 = vdwg.mxu0
    %v272 = vld [vmem:[#allocation4] sm:$0xff]
    %v273 = vld [vmem:[#allocation4 + $0x8] sm:$0xff]
    %v274 = vld [vmem:[#allocation4 + $0x10] sm:$0xff]
    %v275 = vld [vmem:[#allocation4 + $0x18] sm:$0xff]
    %v276 = vld [vmem:[#allocation4 + $0x20] sm:$0xff]
    %v277 = vld [vmem:[#allocation4 + $0x28] sm:$0xff]
    %v278 = vld [vmem:[#allocation4 + $0x30] sm:$0xff]
    %v279 = vld [vmem:[#allocation4 + $0x38] sm:$0xff]
    %v280 = vld [vmem:[#allocation4 + $0x40] sm:$0xff]
    %v281 = vld [vmem:[#allocation4 + $0x48] sm:$0xff]
    %v282 = vld [vmem:[#allocation4 + $0x50] sm:$0xff]
    %v283 = vld [vmem:[#allocation4 + $0x58] sm:$0xff]
    %v284 = vld [vmem:[#allocation4 + $0x60] sm:$0xff]
    %v285 = vld [vmem:[#allocation4 + $0x68] sm:$0xff]
    %v286 = vld [vmem:[#allocation4 + $0x70] sm:$0xff]
    %v287 = vld [vmem:[#allocation4 + $0x78] sm:$0xff]
    %v288 = vld [vmem:[#allocation4 + $0x80] sm:$0xff]
    %v289 = vld [vmem:[#allocation4 + $0x88] sm:$0xff]
    %v290 = vld [vmem:[#allocation4 + $0x90] sm:$0xff]
    %v291 = vld [vmem:[#allocation4 + $0x98] sm:$0xff]
    %v292 = vld [vmem:[#allocation4 + $0xa0] sm:$0xff]
    %v293 = vld [vmem:[#allocation4 + $0xa8] sm:$0xff]
    %v294 = vld [vmem:[#allocation4 + $0xb0] sm:$0xff]
    %v295 = vld [vmem:[#allocation4 + $0xb8] sm:$0xff]
    %v296 = vld [vmem:[#allocation4 + $0xc0] sm:$0xff]
    %v297 = vld [vmem:[#allocation4 + $0xc8] sm:$0xff]
    %v298 = vld [vmem:[#allocation4 + $0xd0] sm:$0xff]
    %v299 = vld [vmem:[#allocation4 + $0xd8] sm:$0xff]
    %v300 = vld [vmem:[#allocation4 + $0xe0] sm:$0xff]
    %v301 = vld [vmem:[#allocation4 + $0xe8] sm:$0xff]
    %v302 = vld [vmem:[#allocation4 + $0xf0] sm:$0xff]
    %v303 = vld [vmem:[#allocation4 + $0xf8] sm:$0xff]
    %v304 = vld [vmem:[#allocation4 + $0x100] sm:$0xff]
    %v305 = vld [vmem:[#allocation4 + $0x108] sm:$0xff]
    %v306 = vld [vmem:[#allocation4 + $0x110] sm:$0xff]
    %v307 = vld [vmem:[#allocation4 + $0x118] sm:$0xff]
    %v308 = vld [vmem:[#allocation4 + $0x120] sm:$0xff]
    %v309 = vld [vmem:[#allocation4 + $0x128] sm:$0xff]
    %v310 = vld [vmem:[#allocation4 + $0x130] sm:$0xff]
    %v311 = vld [vmem:[#allocation4 + $0x138] sm:$0xff]
    %v312 = vld [vmem:[#allocation4 + $0x140] sm:$0xff]
    %v313 = vld [vmem:[#allocation4 + $0x148] sm:$0xff]
    %v314 = vld [vmem:[#allocation4 + $0x150] sm:$0xff]
    %v315 = vld [vmem:[#allocation4 + $0x158] sm:$0xff]
    %v316 = vld [vmem:[#allocation4 + $0x160] sm:$0xff]
    %v317 = vld [vmem:[#allocation4 + $0x168] sm:$0xff]
    %v318 = vld [vmem:[#allocation4 + $0x170] sm:$0xff]
    %v319 = vld [vmem:[#allocation4 + $0x178] sm:$0xff]
    %v320 = vld [vmem:[#allocation4 + $0x180] sm:$0xff]
    %v321 = vld [vmem:[#allocation4 + $0x188] sm:$0xff]
    %v322 = vld [vmem:[#allocation4 + $0x190] sm:$0xff]
    %v323 = vld [vmem:[#allocation4 + $0x198] sm:$0xff]
    %v324 = vld [vmem:[#allocation4 + $0x1a0] sm:$0xff]
    %v325 = vld [vmem:[#allocation4 + $0x1a8] sm:$0xff]
    %v326 = vld [vmem:[#allocation4 + $0x1b0] sm:$0xff]
    %v327 = vld [vmem:[#allocation4 + $0x1b8] sm:$0xff]
    %v328 = vld [vmem:[#allocation4 + $0x1c0] sm:$0xff]
    %v329 = vld [vmem:[#allocation4 + $0x1c8] sm:$0xff]
    %v330 = vld [vmem:[#allocation4 + $0x1d0] sm:$0xff]
    %v331 = vld [vmem:[#allocation4 + $0x1d8] sm:$0xff]
    %v332 = vld [vmem:[#allocation4 + $0x1e0] sm:$0xff]
    %v333 = vld [vmem:[#allocation4 + $0x1e8] sm:$0xff]
    %v334 = vld [vmem:[#allocation4 + $0x1f0] sm:$0xff]
    %v335 = vld [vmem:[#allocation4 + $0x1f8] sm:$0xff]
    %v336 = vld [vmem:[#allocation2] sm:$0xff]
    %v337 = vld [vmem:[#allocation3] sm:$0xff]
    %338 = vmatpush.msra.mxu0 %v332
    %339 = vmatpush.msra.mxu0 %v328
    %340 = vmatpush.msra.mxu0 %v324
    %341 = vmatpush.msra.mxu0 %v320
    %342 = vmatpush.msra.mxu0 %v316
    %343 = vmatpush.msra.mxu0 %v312
    %344 = vmatpush.msra.mxu0 %v308
    %345 = vmatpush.msra.mxu0 %v304
    %346 = vmatpush.msra.mxu0 %v300
    %347 = vmatpush.msra.mxu0 %v296
    %348 = vmatpush.msra.mxu0 %v292
    %349 = vmatpush.msra.mxu0 %v288
    %350 = vmatpush.msra.mxu0 %v284
    %351 = vmatpush.msra.mxu0 %v280
    %352 = vmatpush.msra.mxu0 %v276
    %353 = vmatpush.msra.mxu0 %v272
    %354 = vmatmul.f32.gmra.mxu0 %v336
    %v355 = vpop.f32.mrf.mxu0
    %v356 = vadd.f32 0.0, %v355
    %357 = vdwg.mxu0
    %358 = vmatpush.msra.mxu0 %v333
    %359 = vmatpush.msra.mxu0 %v329
    %360 = vmatpush.msra.mxu0 %v325
    %361 = vmatpush.msra.mxu0 %v321
    %362 = vmatpush.msra.mxu0 %v317
    %363 = vmatpush.msra.mxu0 %v313
    %364 = vmatpush.msra.mxu0 %v309
    %365 = vmatpush.msra.mxu0 %v305
    %366 = vmatpush.msra.mxu0 %v301
    %367 = vmatpush.msra.mxu0 %v297
    %368 = vmatpush.msra.mxu0 %v293
    %369 = vmatpush.msra.mxu0 %v289
    %370 = vmatpush.msra.mxu0 %v285
    %371 = vmatpush.msra.mxu0 %v281
    %372 = vmatpush.msra.mxu0 %v277
    %373 = vmatpush.msra.mxu0 %v273
    %374 = vmatmul.f32.gmra.mxu0 %v336
    %v375 = vpop.f32.mrf.mxu0
    %v376 = vadd.f32 0.0, %v375
    %377 = vdwg.mxu0
    %378 = vmatpush.msra.mxu0 %v334
    %379 = vmatpush.msra.mxu0 %v330
    %380 = vmatpush.msra.mxu0 %v326
    %381 = vmatpush.msra.mxu0 %v322
    %382 = vmatpush.msra.mxu0 %v318
    %383 = vmatpush.msra.mxu0 %v314
    %384 = vmatpush.msra.mxu0 %v310
    %385 = vmatpush.msra.mxu0 %v306
    %386 = vmatpush.msra.mxu0 %v302
    %387 = vmatpush.msra.mxu0 %v298
    %388 = vmatpush.msra.mxu0 %v294
    %389 = vmatpush.msra.mxu0 %v290
    %390 = vmatpush.msra.mxu0 %v286
    %391 = vmatpush.msra.mxu0 %v282
    %392 = vmatpush.msra.mxu0 %v278
    %393 = vmatpush.msra.mxu0 %v274
    %394 = vmatmul.f32.gmra.mxu0 %v336
    %v395 = vpop.f32.mrf.mxu0
    %v396 = vadd.f32 0.0, %v395
    %397 = vdwg.mxu0
    %398 = vmatpush.msra.mxu0 %v335
    %399 = vmatpush.msra.mxu0 %v331
    %400 = vmatpush.msra.mxu0 %v327
    %401 = vmatpush.msra.mxu0 %v323
    %402 = vmatpush.msra.mxu0 %v319
    %403 = vmatpush.msra.mxu0 %v315
    %404 = vmatpush.msra.mxu0 %v311
    %405 = vmatpush.msra.mxu0 %v307
    %406 = vmatpush.msra.mxu0 %v303
    %407 = vmatpush.msra.mxu0 %v299
    %408 = vmatpush.msra.mxu0 %v295
    %409 = vmatpush.msra.mxu0 %v291
    %410 = vmatpush.msra.mxu0 %v287
    %411 = vmatpush.msra.mxu0 %v283
    %412 = vmatpush.msra.mxu0 %v279
    %413 = vmatpush.msra.mxu0 %v275
    %414 = vmatmul.f32.gmra.mxu0 %v336
    %v415 = vpop.f32.mrf.mxu0
    %v416 = vadd.f32 0.0, %v415
    %417 = vdwg.mxu0
    %v418 = vadd.f32 %v126, %v356
    %v419 = vadd.f32 %v167, %v376
    %v420 = vadd.f32 %v208, %v396
    %v421 = vadd.f32 %v249, %v416
    %v422 = vxor.u32 %v418, 2147483648
    %v423 = vmul.f32 %v422, 1.442695
    %v424 = vpow.pop %v423
    %v425 = vadd.f32 %v424, 1.0
    %v426 = vrcp.pop %v425
    %v427 = vmul.f32 %v425, %v426
    %v428 = vsub.f32 1.0, %v427
    %v429 = vmul.f32 %v426, %v428
    %v430 = vadd.f32 %v426, %v429
    %vm431 = vweird.f32 %v425
    %vm432 = vweird.f32 %v426
    %vm433 = vmor %vm431, %vm432
    %v434 = vsel %vm433, %v426, %v430
    %v435 = vand.u32 2147483647, %v425
    %vm436 = vcmp.eq.f32.partialorder %v435, 8.507059e+37
    %v437 = vand.u32 %v425, 2147483648
    %v438 = vor.u32 1.1754944e-38, %v437
    %v439 = vsel %vm436, %v438, %v434
    %v440 = vmul.f32 1.0, %v439
    %v441 = vxor.u32 %v419, 2147483648
    %v442 = vmul.f32 %v441, 1.442695
    %v443 = vpow.pop %v442
    %v444 = vadd.f32 %v443, 1.0
    %v445 = vrcp.pop %v444
    %v446 = vmul.f32 %v444, %v445
    %v447 = vsub.f32 1.0, %v446
    %v448 = vmul.f32 %v445, %v447
    %v449 = vadd.f32 %v445, %v448
    %vm450 = vweird.f32 %v444
    %vm451 = vweird.f32 %v445
    %vm452 = vmor %vm450, %vm451
    %v453 = vsel %vm452, %v445, %v449
    %v454 = vand.u32 2147483647, %v444
    %vm455 = vcmp.eq.f32.partialorder %v454, 8.507059e+37
    %v456 = vand.u32 %v444, 2147483648
    %v457 = vor.u32 1.1754944e-38, %v456
    %v458 = vsel %vm455, %v457, %v453
    %v459 = vmul.f32 1.0, %v458
    %v460 = vtanh.pop %v420
    %v461 = vxor.u32 %v421, 2147483648
    %v462 = vmul.f32 %v461, 1.442695
    %v463 = vpow.pop %v462
    %v464 = vadd.f32 %v463, 1.0
    %v465 = vrcp.pop %v464
    %v466 = vmul.f32 %v464, %v465
    %v467 = vsub.f32 1.0, %v466
    %v468 = vmul.f32 %v465, %v467
    %v469 = vadd.f32 %v465, %v468
    %vm470 = vweird.f32 %v464
    %vm471 = vweird.f32 %v465
    %vm472 = vmor %vm470, %vm471
    %v473 = vsel %vm472, %v465, %v469
    %v474 = vand.u32 2147483647, %v464
    %vm475 = vcmp.eq.f32.partialorder %v474, 8.507059e+37
    %v476 = vand.u32 %v464, 2147483648
    %v477 = vor.u32 1.1754944e-38, %v476
    %v478 = vsel %vm475, %v477, %v473
    %v479 = vmul.f32 1.0, %v478
    %v480 = vmul.f32 %v459, %v337
    %v481 = vmul.f32 %v440, %v460
    %v482 = vadd.f32 %v480, %v481
    %v483 = vtanh.pop %v482
    %v484 = vmul.f32 %v479, %v483
    %485 = vmatpush.msra.mxu0 %v332
    %486 = vmatpush.msra.mxu0 %v328
    %487 = vmatpush.msra.mxu0 %v324
    %488 = vmatpush.msra.mxu0 %v320
    %489 = vmatpush.msra.mxu0 %v316
    %490 = vmatpush.msra.mxu0 %v312
    %491 = vmatpush.msra.mxu0 %v308
    %492 = vmatpush.msra.mxu0 %v304
    %493 = vmatpush.msra.mxu0 %v300
    %494 = vmatpush.msra.mxu0 %v296
    %495 = vmatpush.msra.mxu0 %v292
    %496 = vmatpush.msra.mxu0 %v288
    %497 = vmatpush.msra.mxu0 %v284
    %498 = vmatpush.msra.mxu0 %v280
    %499 = vmatpush.msra.mxu0 %v276
    %500 = vmatpush.msra.mxu0 %v272
    %501 = vmatmul.f32.gmra.mxu0 %v484
    %v502 = vpop.f32.mrf.mxu0
    %v503 = vadd.f32 0.0, %v502
    %504 = vdwg.mxu0
    %505 = vmatpush.msra.mxu0 %v333
    %506 = vmatpush.msra.mxu0 %v329
    %507 = vmatpush.msra.mxu0 %v325
    %508 = vmatpush.msra.mxu0 %v321
    %509 = vmatpush.msra.mxu0 %v317
    %510 = vmatpush.msra.mxu0 %v313
    %511 = vmatpush.msra.mxu0 %v309
    %512 = vmatpush.msra.mxu0 %v305
    %513 = vmatpush.msra.mxu0 %v301
    %514 = vmatpush.msra.mxu0 %v297
    %515 = vmatpush.msra.mxu0 %v293
    %516 = vmatpush.msra.mxu0 %v289
    %517 = vmatpush.msra.mxu0 %v285
    %518 = vmatpush.msra.mxu0 %v281
    %519 = vmatpush.msra.mxu0 %v277
    %520 = vmatpush.msra.mxu0 %v273
    %521 = vmatmul.f32.gmra.mxu0 %v484
    %v522 = vpop.f32.mrf.mxu0
    %v523 = vadd.f32 0.0, %v522
    %524 = vdwg.mxu0
    %525 = vmatpush.msra.mxu0 %v334
    %526 = vmatpush.msra.mxu0 %v330
    %527 = vmatpush.msra.mxu0 %v326
    %528 = vmatpush.msra.mxu0 %v322
    %529 = vmatpush.msra.mxu0 %v318
    %530 = vmatpush.msra.mxu0 %v314
    %531 = vmatpush.msra.mxu0 %v310
    %532 = vmatpush.msra.mxu0 %v306
    %533 = vmatpush.msra.mxu0 %v302
    %534 = vmatpush.msra.mxu0 %v298
    %535 = vmatpush.msra.mxu0 %v294
    %536 = vmatpush.msra.mxu0 %v290
    %537 = vmatpush.msra.mxu0 %v286
    %538 = vmatpush.msra.mxu0 %v282
    %539 = vmatpush.msra.mxu0 %v278
    %540 = vmatpush.msra.mxu0 %v274
    %541 = vmatmul.f32.gmra.mxu0 %v484
    %v542 = vpop.f32.mrf.mxu0
    %v543 = vadd.f32 0.0, %v542
    %544 = vdwg.mxu0
    %545 = vmatpush.msra.mxu0 %v335
    %546 = vmatpush.msra.mxu0 %v331
    %547 = vmatpush.msra.mxu0 %v327
    %548 = vmatpush.msra.mxu0 %v323
    %549 = vmatpush.msra.mxu0 %v319
    %550 = vmatpush.msra.mxu0 %v315
    %551 = vmatpush.msra.mxu0 %v311
    %552 = vmatpush.msra.mxu0 %v307
    %553 = vmatpush.msra.mxu0 %v303
    %554 = vmatpush.msra.mxu0 %v299
    %555 = vmatpush.msra.mxu0 %v295
    %556 = vmatpush.msra.mxu0 %v291
    %557 = vmatpush.msra.mxu0 %v287
    %558 = vmatpush.msra.mxu0 %v283
    %559 = vmatpush.msra.mxu0 %v279
    %560 = vmatpush.msra.mxu0 %v275
    %561 = vmatmul.f32.gmra.mxu0 %v484
    %v562 = vpop.f32.mrf.mxu0
    %v563 = vadd.f32 0.0, %v562
    %564 = vdwg.mxu0
    %v565 = vadd.f32 %v129, %v503
    %v566 = vadd.f32 %v170, %v523
    %v567 = vadd.f32 %v211, %v543
    %v568 = vadd.f32 %v252, %v563
    %v569 = vxor.u32 %v565, 2147483648
    %v570 = vmul.f32 %v569, 1.442695
    %v571 = vpow.pop %v570
    %v572 = vadd.f32 %v571, 1.0
    %v573 = vrcp.pop %v572
    %v574 = vmul.f32 %v572, %v573
    %v575 = vsub.f32 1.0, %v574
    %v576 = vmul.f32 %v573, %v575
    %v577 = vadd.f32 %v573, %v576
    %vm578 = vweird.f32 %v572
    %vm579 = vweird.f32 %v573
    %vm580 = vmor %vm578, %vm579
    %v581 = vsel %vm580, %v573, %v577
    %v582 = vand.u32 2147483647, %v572
    %vm583 = vcmp.eq.f32.partialorder %v582, 8.507059e+37
    %v584 = vand.u32 %v572, 2147483648
    %v585 = vor.u32 1.1754944e-38, %v584
    %v586 = vsel %vm583, %v585, %v581
    %v587 = vmul.f32 1.0, %v586
    %v588 = vxor.u32 %v566, 2147483648
    %v589 = vmul.f32 %v588, 1.442695
    %v590 = vpow.pop %v589
    %v591 = vadd.f32 %v590, 1.0
    %v592 = vrcp.pop %v591
    %v593 = vmul.f32 %v591, %v592
    %v594 = vsub.f32 1.0, %v593
    %v595 = vmul.f32 %v592, %v594
    %v596 = vadd.f32 %v592, %v595
    %vm597 = vweird.f32 %v591
    %vm598 = vweird.f32 %v592
    %vm599 = vmor %vm597, %vm598
    %v600 = vsel %vm599, %v592, %v596
    %v601 = vand.u32 2147483647, %v591
    %vm602 = vcmp.eq.f32.partialorder %v601, 8.507059e+37
    %v603 = vand.u32 %v591, 2147483648
    %v604 = vor.u32 1.1754944e-38, %v603
    %v605 = vsel %vm602, %v604, %v600
    %v606 = vmul.f32 1.0, %v605
    %v607 = vtanh.pop %v567
    %v608 = vxor.u32 %v568, 2147483648
    %v609 = vmul.f32 %v608, 1.442695
    %v610 = vpow.pop %v609
    %v611 = vadd.f32 %v610, 1.0
    %v612 = vrcp.pop %v611
    %v613 = vmul.f32 %v611, %v612
    %v614 = vsub.f32 1.0, %v613
    %v615 = vmul.f32 %v612, %v614
    %v616 = vadd.f32 %v612, %v615
    %vm617 = vweird.f32 %v611
    %vm618 = vweird.f32 %v612
    %vm619 = vmor %vm617, %vm618
    %v620 = vsel %vm619, %v612, %v616
    %v621 = vand.u32 2147483647, %v611
    %vm622 = vcmp.eq.f32.partialorder %v621, 8.507059e+37
    %v623 = vand.u32 %v611, 2147483648
    %v624 = vor.u32 1.1754944e-38, %v623
    %v625 = vsel %vm622, %v624, %v620
    %v626 = vmul.f32 1.0, %v625
    %v627 = vmul.f32 %v606, %v482
    %v628 = vmul.f32 %v587, %v607
    %v629 = vadd.f32 %v627, %v628
    %v630 = vtanh.pop %v629
    %v631 = vmul.f32 %v626, %v630
    %632 = vmatpush.msra.mxu0 %v332
    %633 = vmatpush.msra.mxu0 %v328
    %634 = vmatpush.msra.mxu0 %v324
    %635 = vmatpush.msra.mxu0 %v320
    %636 = vmatpush.msra.mxu0 %v316
    %637 = vmatpush.msra.mxu0 %v312
    %638 = vmatpush.msra.mxu0 %v308
    %639 = vmatpush.msra.mxu0 %v304
    %640 = vmatpush.msra.mxu0 %v300
    %641 = vmatpush.msra.mxu0 %v296
    %642 = vmatpush.msra.mxu0 %v292
    %643 = vmatpush.msra.mxu0 %v288
    %644 = vmatpush.msra.mxu0 %v284
    %645 = vmatpush.msra.mxu0 %v280
    %646 = vmatpush.msra.mxu0 %v276
    %647 = vmatpush.msra.mxu0 %v272
    %648 = vmatmul.f32.gmra.mxu0 %v631
    %v649 = vpop.f32.mrf.mxu0
    %v650 = vadd.f32 0.0, %v649
    %651 = vdwg.mxu0
    %652 = vmatpush.msra.mxu0 %v333
    %653 = vmatpush.msra.mxu0 %v329
    %654 = vmatpush.msra.mxu0 %v325
    %655 = vmatpush.msra.mxu0 %v321
    %656 = vmatpush.msra.mxu0 %v317
    %657 = vmatpush.msra.mxu0 %v313
    %658 = vmatpush.msra.mxu0 %v309
    %659 = vmatpush.msra.mxu0 %v305
    %660 = vmatpush.msra.mxu0 %v301
    %661 = vmatpush.msra.mxu0 %v297
    %662 = vmatpush.msra.mxu0 %v293
    %663 = vmatpush.msra.mxu0 %v289
    %664 = vmatpush.msra.mxu0 %v285
    %665 = vmatpush.msra.mxu0 %v281
    %666 = vmatpush.msra.mxu0 %v277
    %667 = vmatpush.msra.mxu0 %v273
    %668 = vmatmul.f32.gmra.mxu0 %v631
    %v669 = vpop.f32.mrf.mxu0
    %v670 = vadd.f32 0.0, %v669
    %671 = vdwg.mxu0
    %672 = vmatpush.msra.mxu0 %v334
    %673 = vmatpush.msra.mxu0 %v330
    %674 = vmatpush.msra.mxu0 %v326
    %675 = vmatpush.msra.mxu0 %v322
    %676 = vmatpush.msra.mxu0 %v318
    %677 = vmatpush.msra.mxu0 %v314
    %678 = vmatpush.msra.mxu0 %v310
    %679 = vmatpush.msra.mxu0 %v306
    %680 = vmatpush.msra.mxu0 %v302
    %681 = vmatpush.msra.mxu0 %v298
    %682 = vmatpush.msra.mxu0 %v294
    %683 = vmatpush.msra.mxu0 %v290
    %684 = vmatpush.msra.mxu0 %v286
    %685 = vmatpush.msra.mxu0 %v282
    %686 = vmatpush.msra.mxu0 %v278
    %687 = vmatpush.msra.mxu0 %v274
    %688 = vmatmul.f32.gmra.mxu0 %v631
    %v689 = vpop.f32.mrf.mxu0
    %v690 = vadd.f32 0.0, %v689
    %691 = vdwg.mxu0
    %692 = vmatpush.msra.mxu0 %v335
    %693 = vmatpush.msra.mxu0 %v331
    %694 = vmatpush.msra.mxu0 %v327
    %695 = vmatpush.msra.mxu0 %v323
    %696 = vmatpush.msra.mxu0 %v319
    %697 = vmatpush.msra.mxu0 %v315
    %698 = vmatpush.msra.mxu0 %v311
    %699 = vmatpush.msra.mxu0 %v307
    %700 = vmatpush.msra.mxu0 %v303
    %701 = vmatpush.msra.mxu0 %v299
    %702 = vmatpush.msra.mxu0 %v295
    %703 = vmatpush.msra.mxu0 %v291
    %704 = vmatpush.msra.mxu0 %v287
    %705 = vmatpush.msra.mxu0 %v283
    %706 = vmatpush.msra.mxu0 %v279
    %707 = vmatpush.msra.mxu0 %v275
    %708 = vmatmul.f32.gmra.mxu0 %v631
    %v709 = vpop.f32.mrf.mxu0
    %v710 = vadd.f32 0.0, %v709
    %711 = vdwg.mxu0
    %v712 = vadd.f32 %v132, %v650
    %v713 = vadd.f32 %v173, %v670
    %v714 = vadd.f32 %v214, %v690
    %v715 = vadd.f32 %v255, %v710
    %v716 = vxor.u32 %v712, 2147483648
    %v717 = vmul.f32 %v716, 1.442695
    %v718 = vpow.pop %v717
    %v719 = vadd.f32 %v718, 1.0
    %v720 = vrcp.pop %v719
    %v721 = vmul.f32 %v719, %v720
    %v722 = vsub.f32 1.0, %v721
    %v723 = vmul.f32 %v720, %v722
    %v724 = vadd.f32 %v720, %v723
    %vm725 = vweird.f32 %v719
    %vm726 = vweird.f32 %v720
    %vm727 = vmor %vm725, %vm726
    %v728 = vsel %vm727, %v720, %v724
    %v729 = vand.u32 2147483647, %v719
    %vm730 = vcmp.eq.f32.partialorder %v729, 8.507059e+37
    %v731 = vand.u32 %v719, 2147483648
    %v732 = vor.u32 1.1754944e-38, %v731
    %v733 = vsel %vm730, %v732, %v728
    %v734 = vmul.f32 1.0, %v733
    %v735 = vxor.u32 %v713, 2147483648
    %v736 = vmul.f32 %v735, 1.442695
    %v737 = vpow.pop %v736
    %v738 = vadd.f32 %v737, 1.0
    %v739 = vrcp.pop %v738
    %v740 = vmul.f32 %v738, %v739
    %v741 = vsub.f32 1.0, %v740
    %v742 = vmul.f32 %v739, %v741
    %v743 = vadd.f32 %v739, %v742
    %vm744 = vweird.f32 %v738
    %vm745 = vweird.f32 %v739
    %vm746 = vmor %vm744, %vm745
    %v747 = vsel %vm746, %v739, %v743
    %v748 = vand.u32 2147483647, %v738
    %vm749 = vcmp.eq.f32.partialorder %v748, 8.507059e+37
    %v750 = vand.u32 %v738, 2147483648
    %v751 = vor.u32 1.1754944e-38, %v750
    %v752 = vsel %vm749, %v751, %v747
    %v753 = vmul.f32 1.0, %v752
    %v754 = vtanh.pop %v714
    %v755 = vxor.u32 %v715, 2147483648
    %v756 = vmul.f32 %v755, 1.442695
    %v757 = vpow.pop %v756
    %v758 = vadd.f32 %v757, 1.0
    %v759 = vrcp.pop %v758
    %v760 = vmul.f32 %v758, %v759
    %v761 = vsub.f32 1.0, %v760
    %v762 = vmul.f32 %v759, %v761
    %v763 = vadd.f32 %v759, %v762
    %vm764 = vweird.f32 %v758
    %vm765 = vweird.f32 %v759
    %vm766 = vmor %vm764, %vm765
    %v767 = vsel %vm766, %v759, %v763
    %v768 = vand.u32 2147483647, %v758
    %vm769 = vcmp.eq.f32.partialorder %v768, 8.507059e+37
    %v770 = vand.u32 %v758, 2147483648
    %v771 = vor.u32 1.1754944e-38, %v770
    %v772 = vsel %vm769, %v771, %v767
    %v773 = vmul.f32 1.0, %v772
    %v774 = vmul.f32 %v753, %v629
    %v775 = vmul.f32 %v734, %v754
    %v776 = vadd.f32 %v774, %v775
    %v777 = vtanh.pop %v776
    %v778 = vmul.f32 %v773, %v777
    %779 = vmatpush.msra.mxu0 %v332
    %780 = vmatpush.msra.mxu0 %v328
    %781 = vmatpush.msra.mxu0 %v324
    %782 = vmatpush.msra.mxu0 %v320
    %783 = vmatpush.msra.mxu0 %v316
    %784 = vmatpush.msra.mxu0 %v312
    %785 = vmatpush.msra.mxu0 %v308
    %786 = vmatpush.msra.mxu0 %v304
    %787 = vmatpush.msra.mxu0 %v300
    %788 = vmatpush.msra.mxu0 %v296
    %789 = vmatpush.msra.mxu0 %v292
    %790 = vmatpush.msra.mxu0 %v288
    %791 = vmatpush.msra.mxu0 %v284
    %792 = vmatpush.msra.mxu0 %v280
    %793 = vmatpush.msra.mxu0 %v276
    %794 = vmatpush.msra.mxu0 %v272
    %795 = vmatmul.f32.gmra.mxu0 %v778
    %v796 = vpop.f32.mrf.mxu0
    %v797 = vadd.f32 0.0, %v796
    %798 = vdwg.mxu0
    %799 = vmatpush.msra.mxu0 %v333
    %800 = vmatpush.msra.mxu0 %v329
    %801 = vmatpush.msra.mxu0 %v325
    %802 = vmatpush.msra.mxu0 %v321
    %803 = vmatpush.msra.mxu0 %v317
    %804 = vmatpush.msra.mxu0 %v313
    %805 = vmatpush.msra.mxu0 %v309
    %806 = vmatpush.msra.mxu0 %v305
    %807 = vmatpush.msra.mxu0 %v301
    %808 = vmatpush.msra.mxu0 %v297
    %809 = vmatpush.msra.mxu0 %v293
    %810 = vmatpush.msra.mxu0 %v289
    %811 = vmatpush.msra.mxu0 %v285
    %812 = vmatpush.msra.mxu0 %v281
    %813 = vmatpush.msra.mxu0 %v277
    %814 = vmatpush.msra.mxu0 %v273
    %815 = vmatmul.f32.gmra.mxu0 %v778
    %v816 = vpop.f32.mrf.mxu0
    %v817 = vadd.f32 0.0, %v816
    %818 = vdwg.mxu0
    %819 = vmatpush.msra.mxu0 %v334
    %820 = vmatpush.msra.mxu0 %v330
    %821 = vmatpush.msra.mxu0 %v326
    %822 = vmatpush.msra.mxu0 %v322
    %823 = vmatpush.msra.mxu0 %v318
    %824 = vmatpush.msra.mxu0 %v314
    %825 = vmatpush.msra.mxu0 %v310
    %826 = vmatpush.msra.mxu0 %v306
    %827 = vmatpush.msra.mxu0 %v302
    %828 = vmatpush.msra.mxu0 %v298
    %829 = vmatpush.msra.mxu0 %v294
    %830 = vmatpush.msra.mxu0 %v290
    %831 = vmatpush.msra.mxu0 %v286
    %832 = vmatpush.msra.mxu0 %v282
    %833 = vmatpush.msra.mxu0 %v278
    %834 = vmatpush.msra.mxu0 %v274
    %835 = vmatmul.f32.gmra.mxu0 %v778
    %v836 = vpop.f32.mrf.mxu0
    %v837 = vadd.f32 0.0, %v836
    %838 = vdwg.mxu0
    %839 = vmatpush.msra.mxu0 %v335
    %840 = vmatpush.msra.mxu0 %v331
    %841 = vmatpush.msra.mxu0 %v327
    %842 = vmatpush.msra.mxu0 %v323
    %843 = vmatpush.msra.mxu0 %v319
    %844 = vmatpush.msra.mxu0 %v315
    %845 = vmatpush.msra.mxu0 %v311
    %846 = vmatpush.msra.mxu0 %v307
    %847 = vmatpush.msra.mxu0 %v303
    %848 = vmatpush.msra.mxu0 %v299
    %849 = vmatpush.msra.mxu0 %v295
    %850 = vmatpush.msra.mxu0 %v291
    %851 = vmatpush.msra.mxu0 %v287
    %852 = vmatpush.msra.mxu0 %v283
    %853 = vmatpush.msra.mxu0 %v279
    %854 = vmatpush.msra.mxu0 %v275
    %855 = vmatmul.f32.gmra.mxu0 %v778
    %v856 = vpop.f32.mrf.mxu0
    %v857 = vadd.f32 0.0, %v856
    %858 = vdwg.mxu0
    %v859 = vadd.f32 %v135, %v797
    %v860 = vadd.f32 %v176, %v817
    %v861 = vadd.f32 %v217, %v837
    %v862 = vadd.f32 %v258, %v857
    %v863 = vxor.u32 %v859, 2147483648
    %v864 = vmul.f32 %v863, 1.442695
    %v865 = vpow.pop %v864
    %v866 = vadd.f32 %v865, 1.0
    %v867 = vrcp.pop %v866
    %v868 = vmul.f32 %v866, %v867
    %v869 = vsub.f32 1.0, %v868
    %v870 = vmul.f32 %v867, %v869
    %v871 = vadd.f32 %v867, %v870
    %vm872 = vweird.f32 %v866
    %vm873 = vweird.f32 %v867
    %vm874 = vmor %vm872, %vm873
    %v875 = vsel %vm874, %v867, %v871
    %v876 = vand.u32 2147483647, %v866
    %vm877 = vcmp.eq.f32.partialorder %v876, 8.507059e+37
    %v878 = vand.u32 %v866, 2147483648
    %v879 = vor.u32 1.1754944e-38, %v878
    %v880 = vsel %vm877, %v879, %v875
    %v881 = vmul.f32 1.0, %v880
    %v882 = vxor.u32 %v860, 2147483648
    %v883 = vmul.f32 %v882, 1.442695
    %v884 = vpow.pop %v883
    %v885 = vadd.f32 %v884, 1.0
    %v886 = vrcp.pop %v885
    %v887 = vmul.f32 %v885, %v886
    %v888 = vsub.f32 1.0, %v887
    %v889 = vmul.f32 %v886, %v888
    %v890 = vadd.f32 %v886, %v889
    %vm891 = vweird.f32 %v885
    %vm892 = vweird.f32 %v886
    %vm893 = vmor %vm891, %vm892
    %v894 = vsel %vm893, %v886, %v890
    %v895 = vand.u32 2147483647, %v885
    %vm896 = vcmp.eq.f32.partialorder %v895, 8.507059e+37
    %v897 = vand.u32 %v885, 2147483648
    %v898 = vor.u32 1.1754944e-38, %v897
    %v899 = vsel %vm896, %v898, %v894
    %v900 = vmul.f32 1.0, %v899
    %v901 = vtanh.pop %v861
    %v902 = vxor.u32 %v862, 2147483648
    %v903 = vmul.f32 %v902, 1.442695
    %v904 = vpow.pop %v903
    %v905 = vadd.f32 %v904, 1.0
    %v906 = vrcp.pop %v905
    %v907 = vmul.f32 %v905, %v906
    %v908 = vsub.f32 1.0, %v907
    %v909 = vmul.f32 %v906, %v908
    %v910 = vadd.f32 %v906, %v909
    %vm911 = vweird.f32 %v905
    %vm912 = vweird.f32 %v906
    %vm913 = vmor %vm911, %vm912
    %v914 = vsel %vm913, %v906, %v910
    %v915 = vand.u32 2147483647, %v905
    %vm916 = vcmp.eq.f32.partialorder %v915, 8.507059e+37
    %v917 = vand.u32 %v905, 2147483648
    %v918 = vor.u32 1.1754944e-38, %v917
    %v919 = vsel %vm916, %v918, %v914
    %v920 = vmul.f32 1.0, %v919
    %v921 = vmul.f32 %v900, %v776
    %v922 = vmul.f32 %v881, %v901
    %v923 = vadd.f32 %v921, %v922
    %v924 = vtanh.pop %v923
    %v925 = vmul.f32 %v920, %v924
    %926 = vmatpush.msra.mxu0 %v332
    %927 = vmatpush.msra.mxu0 %v328
    %928 = vmatpush.msra.mxu0 %v324
    %929 = vmatpush.msra.mxu0 %v320
    %930 = vmatpush.msra.mxu0 %v316
    %931 = vmatpush.msra.mxu0 %v312
    %932 = vmatpush.msra.mxu0 %v308
    %933 = vmatpush.msra.mxu0 %v304
    %934 = vmatpush.msra.mxu0 %v300
    %935 = vmatpush.msra.mxu0 %v296
    %936 = vmatpush.msra.mxu0 %v292
    %937 = vmatpush.msra.mxu0 %v288
    %938 = vmatpush.msra.mxu0 %v284
    %939 = vmatpush.msra.mxu0 %v280
    %940 = vmatpush.msra.mxu0 %v276
    %941 = vmatpush.msra.mxu0 %v272
    %942 = vmatmul.f32.gmra.mxu0 %v925
    %v943 = vpop.f32.mrf.mxu0
    %v944 = vadd.f32 0.0, %v943
    %945 = vdwg.mxu0
    %946 = vmatpush.msra.mxu0 %v333
    %947 = vmatpush.msra.mxu0 %v329
    %948 = vmatpush.msra.mxu0 %v325
    %949 = vmatpush.msra.mxu0 %v321
    %950 = vmatpush.msra.mxu0 %v317
    %951 = vmatpush.msra.mxu0 %v313
    %952 = vmatpush.msra.mxu0 %v309
    %953 = vmatpush.msra.mxu0 %v305
    %954 = vmatpush.msra.mxu0 %v301
    %955 = vmatpush.msra.mxu0 %v297
    %956 = vmatpush.msra.mxu0 %v293
    %957 = vmatpush.msra.mxu0 %v289
    %958 = vmatpush.msra.mxu0 %v285
    %959 = vmatpush.msra.mxu0 %v281
    %960 = vmatpush.msra.mxu0 %v277
    %961 = vmatpush.msra.mxu0 %v273
    %962 = vmatmul.f32.gmra.mxu0 %v925
    %v963 = vpop.f32.mrf.mxu0
    %v964 = vadd.f32 0.0, %v963
    %965 = vdwg.mxu0
    %966 = vmatpush.msra.mxu0 %v334
    %967 = vmatpush.msra.mxu0 %v330
    %968 = vmatpush.msra.mxu0 %v326
    %969 = vmatpush.msra.mxu0 %v322
    %970 = vmatpush.msra.mxu0 %v318
    %971 = vmatpush.msra.mxu0 %v314
    %972 = vmatpush.msra.mxu0 %v310
    %973 = vmatpush.msra.mxu0 %v306
    %974 = vmatpush.msra.mxu0 %v302
    %975 = vmatpush.msra.mxu0 %v298
    %976 = vmatpush.msra.mxu0 %v294
    %977 = vmatpush.msra.mxu0 %v290
    %978 = vmatpush.msra.mxu0 %v286
    %979 = vmatpush.msra.mxu0 %v282
    %980 = vmatpush.msra.mxu0 %v278
    %981 = vmatpush.msra.mxu0 %v274
    %982 = vmatmul.f32.gmra.mxu0 %v925
    %v983 = vpop.f32.mrf.mxu0
    %v984 = vadd.f32 0.0, %v983
    %985 = vdwg.mxu0
    %986 = vmatpush.msra.mxu0 %v335
    %987 = vmatpush.msra.mxu0 %v331
    %988 = vmatpush.msra.mxu0 %v327
    %989 = vmatpush.msra.mxu0 %v323
    %990 = vmatpush.msra.mxu0 %v319
    %991 = vmatpush.msra.mxu0 %v315
    %992 = vmatpush.msra.mxu0 %v311
    %993 = vmatpush.msra.mxu0 %v307
    %994 = vmatpush.msra.mxu0 %v303
    %995 = vmatpush.msra.mxu0 %v299
    %996 = vmatpush.msra.mxu0 %v295
    %997 = vmatpush.msra.mxu0 %v291
    %998 = vmatpush.msra.mxu0 %v287
    %999 = vmatpush.msra.mxu0 %v283
    %1000 = vmatpush.msra.mxu0 %v279
    %1001 = vmatpush.msra.mxu0 %v275
    %1002 = vmatmul.f32.gmra.mxu0 %v925
    %v1003 = vpop.f32.mrf.mxu0
    %v1004 = vadd.f32 0.0, %v1003
    %1005 = vdwg.mxu0
    %v1006 = vadd.f32 %v138, %v944
    %v1007 = vadd.f32 %v179, %v964
    %v1008 = vadd.f32 %v220, %v984
    %v1009 = vadd.f32 %v261, %v1004
    %v1010 = vxor.u32 %v1006, 2147483648
    %v1011 = vmul.f32 %v1010, 1.442695
    %v1012 = vpow.pop %v1011
    %v1013 = vadd.f32 %v1012, 1.0
    %v1014 = vrcp.pop %v1013
    %v1015 = vmul.f32 %v1013, %v1014
    %v1016 = vsub.f32 1.0, %v1015
    %v1017 = vmul.f32 %v1014, %v1016
    %v1018 = vadd.f32 %v1014, %v1017
    %vm1019 = vweird.f32 %v1013
    %vm1020 = vweird.f32 %v1014
    %vm1021 = vmor %vm1019, %vm1020
    %v1022 = vsel %vm1021, %v1014, %v1018
    %v1023 = vand.u32 2147483647, %v1013
    %vm1024 = vcmp.eq.f32.partialorder %v1023, 8.507059e+37
    %v1025 = vand.u32 %v1013, 2147483648
    %v1026 = vor.u32 1.1754944e-38, %v1025
    %v1027 = vsel %vm1024, %v1026, %v1022
    %v1028 = vmul.f32 1.0, %v1027
    %v1029 = vxor.u32 %v1007, 2147483648
    %v1030 = vmul.f32 %v1029, 1.442695
    %v1031 = vpow.pop %v1030
    %v1032 = vadd.f32 %v1031, 1.0
    %v1033 = vrcp.pop %v1032
    %v1034 = vmul.f32 %v1032, %v1033
    %v1035 = vsub.f32 1.0, %v1034
    %v1036 = vmul.f32 %v1033, %v1035
    %v1037 = vadd.f32 %v1033, %v1036
    %vm1038 = vweird.f32 %v1032
    %vm1039 = vweird.f32 %v1033
    %vm1040 = vmor %vm1038, %vm1039
    %v1041 = vsel %vm1040, %v1033, %v1037
    %v1042 = vand.u32 2147483647, %v1032
    %vm1043 = vcmp.eq.f32.partialorder %v1042, 8.507059e+37
    %v1044 = vand.u32 %v1032, 2147483648
    %v1045 = vor.u32 1.1754944e-38, %v1044
    %v1046 = vsel %vm1043, %v1045, %v1041
    %v1047 = vmul.f32 1.0, %v1046
    %v1048 = vtanh.pop %v1008
    %v1049 = vxor.u32 %v1009, 2147483648
    %v1050 = vmul.f32 %v1049, 1.442695
    %v1051 = vpow.pop %v1050
    %v1052 = vadd.f32 %v1051, 1.0
    %v1053 = vrcp.pop %v1052
    %v1054 = vmul.f32 %v1052, %v1053
    %v1055 = vsub.f32 1.0, %v1054
    %v1056 = vmul.f32 %v1053, %v1055
    %v1057 = vadd.f32 %v1053, %v1056
    %vm1058 = vweird.f32 %v1052
    %vm1059 = vweird.f32 %v1053
    %vm1060 = vmor %vm1058, %vm1059
    %v1061 = vsel %vm1060, %v1053, %v1057
    %v1062 = vand.u32 2147483647, %v1052
    %vm1063 = vcmp.eq.f32.partialorder %v1062, 8.507059e+37
    %v1064 = vand.u32 %v1052, 2147483648
    %v1065 = vor.u32 1.1754944e-38, %v1064
    %v1066 = vsel %vm1063, %v1065, %v1061
    %v1067 = vmul.f32 1.0, %v1066
    %v1068 = vmul.f32 %v1047, %v923
    %v1069 = vmul.f32 %v1028, %v1048
    %v1070 = vadd.f32 %v1068, %v1069
    %v1071 = vtanh.pop %v1070
    %v1072 = vmul.f32 %v1067, %v1071
    %1073 = vmatpush.msra.mxu0 %v332
    %1074 = vmatpush.msra.mxu0 %v328
    %1075 = vmatpush.msra.mxu0 %v324
    %1076 = vmatpush.msra.mxu0 %v320
    %1077 = vmatpush.msra.mxu0 %v316
    %1078 = vmatpush.msra.mxu0 %v312
    %1079 = vmatpush.msra.mxu0 %v308
    %1080 = vmatpush.msra.mxu0 %v304
    %1081 = vmatpush.msra.mxu0 %v300
    %1082 = vmatpush.msra.mxu0 %v296
    %1083 = vmatpush.msra.mxu0 %v292
    %1084 = vmatpush.msra.mxu0 %v288
    %1085 = vmatpush.msra.mxu0 %v284
    %1086 = vmatpush.msra.mxu0 %v280
    %1087 = vmatpush.msra.mxu0 %v276
    %1088 = vmatpush.msra.mxu0 %v272
    %1089 = vmatmul.f32.gmra.mxu0 %v1072
    %v1090 = vpop.f32.mrf.mxu0
    %v1091 = vadd.f32 0.0, %v1090
    %1092 = vdwg.mxu0
    %1093 = vmatpush.msra.mxu0 %v333
    %1094 = vmatpush.msra.mxu0 %v329
    %1095 = vmatpush.msra.mxu0 %v325
    %1096 = vmatpush.msra.mxu0 %v321
    %1097 = vmatpush.msra.mxu0 %v317
    %1098 = vmatpush.msra.mxu0 %v313
    %1099 = vmatpush.msra.mxu0 %v309
    %1100 = vmatpush.msra.mxu0 %v305
    %1101 = vmatpush.msra.mxu0 %v301
    %1102 = vmatpush.msra.mxu0 %v297
    %1103 = vmatpush.msra.mxu0 %v293
    %1104 = vmatpush.msra.mxu0 %v289
    %1105 = vmatpush.msra.mxu0 %v285
    %1106 = vmatpush.msra.mxu0 %v281
    %1107 = vmatpush.msra.mxu0 %v277
    %1108 = vmatpush.msra.mxu0 %v273
    %1109 = vmatmul.f32.gmra.mxu0 %v1072
    %v1110 = vpop.f32.mrf.mxu0
    %v1111 = vadd.f32 0.0, %v1110
    %1112 = vdwg.mxu0
    %1113 = vmatpush.msra.mxu0 %v334
    %1114 = vmatpush.msra.mxu0 %v330
    %1115 = vmatpush.msra.mxu0 %v326
    %1116 = vmatpush.msra.mxu0 %v322
    %1117 = vmatpush.msra.mxu0 %v318
    %1118 = vmatpush.msra.mxu0 %v314
    %1119 = vmatpush.msra.mxu0 %v310
    %1120 = vmatpush.msra.mxu0 %v306
    %1121 = vmatpush.msra.mxu0 %v302
    %1122 = vmatpush.msra.mxu0 %v298
    %1123 = vmatpush.msra.mxu0 %v294
    %1124 = vmatpush.msra.mxu0 %v290
    %1125 = vmatpush.msra.mxu0 %v286
    %1126 = vmatpush.msra.mxu0 %v282
    %1127 = vmatpush.msra.mxu0 %v278
    %1128 = vmatpush.msra.mxu0 %v274
    %1129 = vmatmul.f32.gmra.mxu0 %v1072
    %v1130 = vpop.f32.mrf.mxu0
    %v1131 = vadd.f32 0.0, %v1130
    %1132 = vdwg.mxu0
    %1133 = vmatpush.msra.mxu0 %v335
    %1134 = vmatpush.msra.mxu0 %v331
    %1135 = vmatpush.msra.mxu0 %v327
    %1136 = vmatpush.msra.mxu0 %v323
    %1137 = vmatpush.msra.mxu0 %v319
    %1138 = vmatpush.msra.mxu0 %v315
    %1139 = vmatpush.msra.mxu0 %v311
    %1140 = vmatpush.msra.mxu0 %v307
    %1141 = vmatpush.msra.mxu0 %v303
    %1142 = vmatpush.msra.mxu0 %v299
    %1143 = vmatpush.msra.mxu0 %v295
    %1144 = vmatpush.msra.mxu0 %v291
    %1145 = vmatpush.msra.mxu0 %v287
    %1146 = vmatpush.msra.mxu0 %v283
    %1147 = vmatpush.msra.mxu0 %v279
    %1148 = vmatpush.msra.mxu0 %v275
    %1149 = vmatmul.f32.gmra.mxu0 %v1072
    %v1150 = vpop.f32.mrf.mxu0
    %v1151 = vadd.f32 0.0, %v1150
    %1152 = vdwg.mxu0
    %v1153 = vadd.f32 %v141, %v1091
    %v1154 = vadd.f32 %v182, %v1111
    %v1155 = vadd.f32 %v223, %v1131
    %v1156 = vadd.f32 %v264, %v1151
    %v1157 = vxor.u32 %v1153, 2147483648
    %v1158 = vmul.f32 %v1157, 1.442695
    %v1159 = vpow.pop %v1158
    %v1160 = vadd.f32 %v1159, 1.0
    %v1161 = vrcp.pop %v1160
    %v1162 = vmul.f32 %v1160, %v1161
    %v1163 = vsub.f32 1.0, %v1162
    %v1164 = vmul.f32 %v1161, %v1163
    %v1165 = vadd.f32 %v1161, %v1164
    %vm1166 = vweird.f32 %v1160
    %vm1167 = vweird.f32 %v1161
    %vm1168 = vmor %vm1166, %vm1167
    %v1169 = vsel %vm1168, %v1161, %v1165
    %v1170 = vand.u32 2147483647, %v1160
    %vm1171 = vcmp.eq.f32.partialorder %v1170, 8.507059e+37
    %v1172 = vand.u32 %v1160, 2147483648
    %v1173 = vor.u32 1.1754944e-38, %v1172
    %v1174 = vsel %vm1171, %v1173, %v1169
    %v1175 = vmul.f32 1.0, %v1174
    %v1176 = vxor.u32 %v1154, 2147483648
    %v1177 = vmul.f32 %v1176, 1.442695
    %v1178 = vpow.pop %v1177
    %v1179 = vadd.f32 %v1178, 1.0
    %v1180 = vrcp.pop %v1179
    %v1181 = vmul.f32 %v1179, %v1180
    %v1182 = vsub.f32 1.0, %v1181
    %v1183 = vmul.f32 %v1180, %v1182
    %v1184 = vadd.f32 %v1180, %v1183
    %vm1185 = vweird.f32 %v1179
    %vm1186 = vweird.f32 %v1180
    %vm1187 = vmor %vm1185, %vm1186
    %v1188 = vsel %vm1187, %v1180, %v1184
    %v1189 = vand.u32 2147483647, %v1179
    %vm1190 = vcmp.eq.f32.partialorder %v1189, 8.507059e+37
    %v1191 = vand.u32 %v1179, 2147483648
    %v1192 = vor.u32 1.1754944e-38, %v1191
    %v1193 = vsel %vm1190, %v1192, %v1188
    %v1194 = vmul.f32 1.0, %v1193
    %v1195 = vtanh.pop %v1155
    %v1196 = vxor.u32 %v1156, 2147483648
    %v1197 = vmul.f32 %v1196, 1.442695
    %v1198 = vpow.pop %v1197
    %v1199 = vadd.f32 %v1198, 1.0
    %v1200 = vrcp.pop %v1199
    %v1201 = vmul.f32 %v1199, %v1200
    %v1202 = vsub.f32 1.0, %v1201
    %v1203 = vmul.f32 %v1200, %v1202
    %v1204 = vadd.f32 %v1200, %v1203
    %vm1205 = vweird.f32 %v1199
    %vm1206 = vweird.f32 %v1200
    %vm1207 = vmor %vm1205, %vm1206
    %v1208 = vsel %vm1207, %v1200, %v1204
    %v1209 = vand.u32 2147483647, %v1199
    %vm1210 = vcmp.eq.f32.partialorder %v1209, 8.507059e+37
    %v1211 = vand.u32 %v1199, 2147483648
    %v1212 = vor.u32 1.1754944e-38, %v1211
    %v1213 = vsel %vm1210, %v1212, %v1208
    %v1214 = vmul.f32 1.0, %v1213
    %v1215 = vmul.f32 %v1194, %v1070
    %v1216 = vmul.f32 %v1175, %v1195
    %v1217 = vadd.f32 %v1215, %v1216
    %v1218 = vtanh.pop %v1217
    %v1219 = vmul.f32 %v1214, %v1218
    %1220 = vmatpush.msra.mxu0 %v332
    %1221 = vmatpush.msra.mxu0 %v328
    %1222 = vmatpush.msra.mxu0 %v324
    %1223 = vmatpush.msra.mxu0 %v320
    %1224 = vmatpush.msra.mxu0 %v316
    %1225 = vmatpush.msra.mxu0 %v312
    %1226 = vmatpush.msra.mxu0 %v308
    %1227 = vmatpush.msra.mxu0 %v304
    %1228 = vmatpush.msra.mxu0 %v300
    %1229 = vmatpush.msra.mxu0 %v296
    %1230 = vmatpush.msra.mxu0 %v292
    %1231 = vmatpush.msra.mxu0 %v288
    %1232 = vmatpush.msra.mxu0 %v284
    %1233 = vmatpush.msra.mxu0 %v280
    %1234 = vmatpush.msra.mxu0 %v276
    %1235 = vmatpush.msra.mxu0 %v272
    %1236 = vmatmul.f32.gmra.mxu0 %v1219
    %v1237 = vpop.f32.mrf.mxu0
    %v1238 = vadd.f32 0.0, %v1237
    %1239 = vdwg.mxu0
    %1240 = vmatpush.msra.mxu0 %v333
    %1241 = vmatpush.msra.mxu0 %v329
    %1242 = vmatpush.msra.mxu0 %v325
    %1243 = vmatpush.msra.mxu0 %v321
    %1244 = vmatpush.msra.mxu0 %v317
    %1245 = vmatpush.msra.mxu0 %v313
    %1246 = vmatpush.msra.mxu0 %v309
    %1247 = vmatpush.msra.mxu0 %v305
    %1248 = vmatpush.msra.mxu0 %v301
    %1249 = vmatpush.msra.mxu0 %v297
    %1250 = vmatpush.msra.mxu0 %v293
    %1251 = vmatpush.msra.mxu0 %v289
    %1252 = vmatpush.msra.mxu0 %v285
    %1253 = vmatpush.msra.mxu0 %v281
    %1254 = vmatpush.msra.mxu0 %v277
    %1255 = vmatpush.msra.mxu0 %v273
    %1256 = vmatmul.f32.gmra.mxu0 %v1219
    %v1257 = vpop.f32.mrf.mxu0
    %v1258 = vadd.f32 0.0, %v1257
    %1259 = vdwg.mxu0
    %1260 = vmatpush.msra.mxu0 %v334
    %1261 = vmatpush.msra.mxu0 %v330
    %1262 = vmatpush.msra.mxu0 %v326
    %1263 = vmatpush.msra.mxu0 %v322
    %1264 = vmatpush.msra.mxu0 %v318
    %1265 = vmatpush.msra.mxu0 %v314
    %1266 = vmatpush.msra.mxu0 %v310
    %1267 = vmatpush.msra.mxu0 %v306
    %1268 = vmatpush.msra.mxu0 %v302
    %1269 = vmatpush.msra.mxu0 %v298
    %1270 = vmatpush.msra.mxu0 %v294
    %1271 = vmatpush.msra.mxu0 %v290
    %1272 = vmatpush.msra.mxu0 %v286
    %1273 = vmatpush.msra.mxu0 %v282
    %1274 = vmatpush.msra.mxu0 %v278
    %1275 = vmatpush.msra.mxu0 %v274
    %1276 = vmatmul.f32.gmra.mxu0 %v1219
    %v1277 = vpop.f32.mrf.mxu0
    %v1278 = vadd.f32 0.0, %v1277
    %1279 = vdwg.mxu0
    %1280 = vmatpush.msra.mxu0 %v335
    %1281 = vmatpush.msra.mxu0 %v331
    %1282 = vmatpush.msra.mxu0 %v327
    %1283 = vmatpush.msra.mxu0 %v323
    %1284 = vmatpush.msra.mxu0 %v319
    %1285 = vmatpush.msra.mxu0 %v315
    %1286 = vmatpush.msra.mxu0 %v311
    %1287 = vmatpush.msra.mxu0 %v307
    %1288 = vmatpush.msra.mxu0 %v303
    %1289 = vmatpush.msra.mxu0 %v299
    %1290 = vmatpush.msra.mxu0 %v295
    %1291 = vmatpush.msra.mxu0 %v291
    %1292 = vmatpush.msra.mxu0 %v287
    %1293 = vmatpush.msra.mxu0 %v283
    %1294 = vmatpush.msra.mxu0 %v279
    %1295 = vmatpush.msra.mxu0 %v275
    %1296 = vmatmul.f32.gmra.mxu0 %v1219
    %v1297 = vpop.f32.mrf.mxu0
    %v1298 = vadd.f32 0.0, %v1297
    %1299 = vdwg.mxu0
    %v1300 = vadd.f32 %v144, %v1238
    %v1301 = vadd.f32 %v185, %v1258
    %v1302 = vadd.f32 %v226, %v1278
    %v1303 = vadd.f32 %v267, %v1298
    %v1304 = vxor.u32 %v1300, 2147483648
    %v1305 = vmul.f32 %v1304, 1.442695
    %v1306 = vpow.pop %v1305
    %v1307 = vadd.f32 %v1306, 1.0
    %v1308 = vrcp.pop %v1307
    %v1309 = vmul.f32 %v1307, %v1308
    %v1310 = vsub.f32 1.0, %v1309
    %v1311 = vmul.f32 %v1308, %v1310
    %v1312 = vadd.f32 %v1308, %v1311
    %vm1313 = vweird.f32 %v1307
    %vm1314 = vweird.f32 %v1308
    %vm1315 = vmor %vm1313, %vm1314
    %v1316 = vsel %vm1315, %v1308, %v1312
    %v1317 = vand.u32 2147483647, %v1307
    %vm1318 = vcmp.eq.f32.partialorder %v1317, 8.507059e+37
    %v1319 = vand.u32 %v1307, 2147483648
    %v1320 = vor.u32 1.1754944e-38, %v1319
    %v1321 = vsel %vm1318, %v1320, %v1316
    %v1322 = vmul.f32 1.0, %v1321
    %v1323 = vxor.u32 %v1301, 2147483648
    %v1324 = vmul.f32 %v1323, 1.442695
    %v1325 = vpow.pop %v1324
    %v1326 = vadd.f32 %v1325, 1.0
    %v1327 = vrcp.pop %v1326
    %v1328 = vmul.f32 %v1326, %v1327
    %v1329 = vsub.f32 1.0, %v1328
    %v1330 = vmul.f32 %v1327, %v1329
    %v1331 = vadd.f32 %v1327, %v1330
    %vm1332 = vweird.f32 %v1326
    %vm1333 = vweird.f32 %v1327
    %vm1334 = vmor %vm1332, %vm1333
    %v1335 = vsel %vm1334, %v1327, %v1331
    %v1336 = vand.u32 2147483647, %v1326
    %vm1337 = vcmp.eq.f32.partialorder %v1336, 8.507059e+37
    %v1338 = vand.u32 %v1326, 2147483648
    %v1339 = vor.u32 1.1754944e-38, %v1338
    %v1340 = vsel %vm1337, %v1339, %v1335
    %v1341 = vmul.f32 1.0, %v1340
    %v1342 = vtanh.pop %v1302
    %v1343 = vxor.u32 %v1303, 2147483648
    %v1344 = vmul.f32 %v1343, 1.442695
    %v1345 = vpow.pop %v1344
    %v1346 = vadd.f32 %v1345, 1.0
    %v1347 = vrcp.pop %v1346
    %v1348 = vmul.f32 %v1346, %v1347
    %v1349 = vsub.f32 1.0, %v1348
    %v1350 = vmul.f32 %v1347, %v1349
    %v1351 = vadd.f32 %v1347, %v1350
    %vm1352 = vweird.f32 %v1346
    %vm1353 = vweird.f32 %v1347
    %vm1354 = vmor %vm1352, %vm1353
    %v1355 = vsel %vm1354, %v1347, %v1351
    %v1356 = vand.u32 2147483647, %v1346
    %vm1357 = vcmp.eq.f32.partialorder %v1356, 8.507059e+37
    %v1358 = vand.u32 %v1346, 2147483648
    %v1359 = vor.u32 1.1754944e-38, %v1358
    %v1360 = vsel %vm1357, %v1359, %v1355
    %v1361 = vmul.f32 1.0, %v1360
    %v1362 = vmul.f32 %v1341, %v1217
    %v1363 = vmul.f32 %v1322, %v1342
    %v1364 = vadd.f32 %v1362, %v1363
    %v1365 = vtanh.pop %v1364
    %v1366 = vmul.f32 %v1361, %v1365
    %1367 = vmatpush.msra.mxu0 %v332
    %1368 = vmatpush.msra.mxu0 %v328
    %1369 = vmatpush.msra.mxu0 %v324
    %1370 = vmatpush.msra.mxu0 %v320
    %1371 = vmatpush.msra.mxu0 %v316
    %1372 = vmatpush.msra.mxu0 %v312
    %1373 = vmatpush.msra.mxu0 %v308
    %1374 = vmatpush.msra.mxu0 %v304
    %1375 = vmatpush.msra.mxu0 %v300
    %1376 = vmatpush.msra.mxu0 %v296
    %1377 = vmatpush.msra.mxu0 %v292
    %1378 = vmatpush.msra.mxu0 %v288
    %1379 = vmatpush.msra.mxu0 %v284
    %1380 = vmatpush.msra.mxu0 %v280
    %1381 = vmatpush.msra.mxu0 %v276
    %1382 = vmatpush.msra.mxu0 %v272
    %1383 = vmatmul.f32.gmra.mxu0 %v1366
    %v1384 = vpop.f32.mrf.mxu0
    %v1385 = vadd.f32 0.0, %v1384
    %1386 = vdwg.mxu0
    %1387 = vmatpush.msra.mxu0 %v333
    %1388 = vmatpush.msra.mxu0 %v329
    %1389 = vmatpush.msra.mxu0 %v325
    %1390 = vmatpush.msra.mxu0 %v321
    %1391 = vmatpush.msra.mxu0 %v317
    %1392 = vmatpush.msra.mxu0 %v313
    %1393 = vmatpush.msra.mxu0 %v309
    %1394 = vmatpush.msra.mxu0 %v305
    %1395 = vmatpush.msra.mxu0 %v301
    %1396 = vmatpush.msra.mxu0 %v297
    %1397 = vmatpush.msra.mxu0 %v293
    %1398 = vmatpush.msra.mxu0 %v289
    %1399 = vmatpush.msra.mxu0 %v285
    %1400 = vmatpush.msra.mxu0 %v281
    %1401 = vmatpush.msra.mxu0 %v277
    %1402 = vmatpush.msra.mxu0 %v273
    %1403 = vmatmul.f32.gmra.mxu0 %v1366
    %v1404 = vpop.f32.mrf.mxu0
    %v1405 = vadd.f32 0.0, %v1404
    %1406 = vdwg.mxu0
    %1407 = vmatpush.msra.mxu0 %v334
    %1408 = vmatpush.msra.mxu0 %v330
    %1409 = vmatpush.msra.mxu0 %v326
    %1410 = vmatpush.msra.mxu0 %v322
    %1411 = vmatpush.msra.mxu0 %v318
    %1412 = vmatpush.msra.mxu0 %v314
    %1413 = vmatpush.msra.mxu0 %v310
    %1414 = vmatpush.msra.mxu0 %v306
    %1415 = vmatpush.msra.mxu0 %v302
    %1416 = vmatpush.msra.mxu0 %v298
    %1417 = vmatpush.msra.mxu0 %v294
    %1418 = vmatpush.msra.mxu0 %v290
    %1419 = vmatpush.msra.mxu0 %v286
    %1420 = vmatpush.msra.mxu0 %v282
    %1421 = vmatpush.msra.mxu0 %v278
    %1422 = vmatpush.msra.mxu0 %v274
    %1423 = vmatmul.f32.gmra.mxu0 %v1366
    %v1424 = vpop.f32.mrf.mxu0
    %v1425 = vadd.f32 0.0, %v1424
    %1426 = vdwg.mxu0
    %1427 = vmatpush.msra.mxu0 %v335
    %1428 = vmatpush.msra.mxu0 %v331
    %1429 = vmatpush.msra.mxu0 %v327
    %1430 = vmatpush.msra.mxu0 %v323
    %1431 = vmatpush.msra.mxu0 %v319
    %1432 = vmatpush.msra.mxu0 %v315
    %1433 = vmatpush.msra.mxu0 %v311
    %1434 = vmatpush.msra.mxu0 %v307
    %1435 = vmatpush.msra.mxu0 %v303
    %1436 = vmatpush.msra.mxu0 %v299
    %1437 = vmatpush.msra.mxu0 %v295
    %1438 = vmatpush.msra.mxu0 %v291
    %1439 = vmatpush.msra.mxu0 %v287
    %1440 = vmatpush.msra.mxu0 %v283
    %1441 = vmatpush.msra.mxu0 %v279
    %1442 = vmatpush.msra.mxu0 %v275
    %1443 = vmatmul.f32.gmra.mxu0 %v1366
    %v1444 = vpop.f32.mrf.mxu0
    %v1445 = vadd.f32 0.0, %v1444
    %1446 = vdwg.mxu0
    %v1447 = vadd.f32 %v147, %v1385
    %v1448 = vadd.f32 %v188, %v1405
    %v1449 = vadd.f32 %v229, %v1425
    %v1450 = vadd.f32 %v270, %v1445
    %v1451 = vxor.u32 %v1447, 2147483648
    %v1452 = vmul.f32 %v1451, 1.442695
    %v1453 = vpow.pop %v1452
    %v1454 = vadd.f32 %v1453, 1.0
    %v1455 = vrcp.pop %v1454
    %v1456 = vmul.f32 %v1454, %v1455
    %v1457 = vsub.f32 1.0, %v1456
    %v1458 = vmul.f32 %v1455, %v1457
    %v1459 = vadd.f32 %v1455, %v1458
    %vm1460 = vweird.f32 %v1454
    %vm1461 = vweird.f32 %v1455
    %vm1462 = vmor %vm1460, %vm1461
    %v1463 = vsel %vm1462, %v1455, %v1459
    %v1464 = vand.u32 2147483647, %v1454
    %vm1465 = vcmp.eq.f32.partialorder %v1464, 8.507059e+37
    %v1466 = vand.u32 %v1454, 2147483648
    %v1467 = vor.u32 1.1754944e-38, %v1466
    %v1468 = vsel %vm1465, %v1467, %v1463
    %v1469 = vmul.f32 1.0, %v1468
    %v1470 = vxor.u32 %v1448, 2147483648
    %v1471 = vmul.f32 %v1470, 1.442695
    %v1472 = vpow.pop %v1471
    %v1473 = vadd.f32 %v1472, 1.0
    %v1474 = vrcp.pop %v1473
    %v1475 = vmul.f32 %v1473, %v1474
    %v1476 = vsub.f32 1.0, %v1475
    %v1477 = vmul.f32 %v1474, %v1476
    %v1478 = vadd.f32 %v1474, %v1477
    %vm1479 = vweird.f32 %v1473
    %vm1480 = vweird.f32 %v1474
    %vm1481 = vmor %vm1479, %vm1480
    %v1482 = vsel %vm1481, %v1474, %v1478
    %v1483 = vand.u32 2147483647, %v1473
    %vm1484 = vcmp.eq.f32.partialorder %v1483, 8.507059e+37
    %v1485 = vand.u32 %v1473, 2147483648
    %v1486 = vor.u32 1.1754944e-38, %v1485
    %v1487 = vsel %vm1484, %v1486, %v1482
    %v1488 = vmul.f32 1.0, %v1487
    %v1489 = vtanh.pop %v1449
    %v1490 = vxor.u32 %v1450, 2147483648
    %v1491 = vmul.f32 %v1490, 1.442695
    %v1492 = vpow.pop %v1491
    %v1493 = vadd.f32 %v1492, 1.0
    %v1494 = vrcp.pop %v1493
    %v1495 = vmul.f32 %v1493, %v1494
    %v1496 = vsub.f32 1.0, %v1495
    %v1497 = vmul.f32 %v1494, %v1496
    %v1498 = vadd.f32 %v1494, %v1497
    %vm1499 = vweird.f32 %v1493
    %vm1500 = vweird.f32 %v1494
    %vm1501 = vmor %vm1499, %vm1500
    %v1502 = vsel %vm1501, %v1494, %v1498
    %v1503 = vand.u32 2147483647, %v1493
    %vm1504 = vcmp.eq.f32.partialorder %v1503, 8.507059e+37
    %v1505 = vand.u32 %v1493, 2147483648
    %v1506 = vor.u32 1.1754944e-38, %v1505
    %v1507 = vsel %vm1504, %v1506, %v1502
    %v1508 = vmul.f32 1.0, %v1507
    %v1509 = vmul.f32 %v1488, %v1364
    %v1510 = vmul.f32 %v1469, %v1489
    %v1511 = vadd.f32 %v1509, %v1510
    %v1512 = vtanh.pop %v1511
    %v1513 = vmul.f32 %v1508, %v1512
    %1514 = vst [vmem:[#allocation2] sm:$0xff] %v1513
    %1515 = vst [vmem:[#allocation3] sm:$0xff] %v1511
    // Predicated region
    $region34: #{tpu_custom_call.1} parent=1 // pred_check
      %p1516 = pneg %p39
    $region35: #{tpu_custom_call.1} parent=1 // pred_check_branch
      %1518 = sbr.rel (%p1516) target = $region37
    $region36: #{tpu_custom_call.1} parent=1 // pred_region
      %v1519 = vld [vmem:[%s4] sm:$0xff]
      %v1520 = vld [vmem:[%s4 + $0x8] sm:$0xff]
      %v1521 = vld [vmem:[%s4 + $0x10] sm:$0xff]
      %v1522 = vld [vmem:[%s4 + $0x18] sm:$0xff]
      %v1523 = vld [vmem:[%s4 + $0x20] sm:$0xff]
      %v1524 = vld [vmem:[%s4 + $0x28] sm:$0xff]
      %v1525 = vld [vmem:[%s4 + $0x30] sm:$0xff]
      %v1526 = vld [vmem:[%s4 + $0x38] sm:$0xff]
      %v1527 = vld [vmem:[%s4 + $0x40] sm:$0xff]
      %v1528 = vld [vmem:[%s4 + $0x48] sm:$0xff]
      %v1529 = vld [vmem:[%s4 + $0x50] sm:$0xff]
      %v1530 = vld [vmem:[%s4 + $0x58] sm:$0xff]
      %v1531 = vld [vmem:[%s4 + $0x60] sm:$0xff]
      %v1532 = vld [vmem:[%s4 + $0x68] sm:$0xff]
      %v1533 = vld [vmem:[%s4 + $0x70] sm:$0xff]
      %v1534 = vld [vmem:[%s4 + $0x78] sm:$0xff]
      %v1535 = vld [vmem:[%s5] sm:$0x1]
      %v1537 = vperm.slane %v1535, 0
      %1539 = vmatpush.msra.mxu0 %v1534
      %1540 = vmatpush.msra.mxu0 %v1533
      %1541 = vmatpush.msra.mxu0 %v1532
      %1542 = vmatpush.msra.mxu0 %v1531
      %1543 = vmatpush.msra.mxu0 %v1530
      %1544 = vmatpush.msra.mxu0 %v1529
      %1545 = vmatpush.msra.mxu0 %v1528
      %1546 = vmatpush.msra.mxu0 %v1527
      %1547 = vmatpush.msra.mxu0 %v1526
      %1548 = vmatpush.msra.mxu0 %v1525
      %1549 = vmatpush.msra.mxu0 %v1524
      %1550 = vmatpush.msra.mxu0 %v1523
      %1551 = vmatpush.msra.mxu0 %v1522
      %1552 = vmatpush.msra.mxu0 %v1521
      %1553 = vmatpush.msra.mxu0 %v1520
      %1554 = vmatpush.msra.mxu0 %v1519
      %1555 = vmatmul.f32.gmra.mxu0 %v1513
      %v1556 = vpop.f32.mrf.mxu0
      %v1557 = vadd.f32 %v1537, %v1556
      %1558 = vdwg.mxu0
      %vm1559 = vcmask 15360
      %1560 = vst.msk [vmem:[%s6] sm:$0xff] %vm1559, %v1557
    $region37: #{tpu_custom_call.1} parent=1 // pred_fallthru
      _
    // Predicated region
    $region38: #{tpu_custom_call.1} parent=1 // pred_check
      _
    $region39: #{tpu_custom_call.1} parent=1 // pred_check_branch
      %1562 = sbr.rel (0) target = $region41
    $region40: #{tpu_custom_call.1} parent=1 // pred_region
      _
    $region41: #{tpu_custom_call.1} parent=1 // pred_fallthru
      _
    // Predicated region
    $region42: #{tpu_custom_call.1} parent=1 // pred_check
      _
    $region43: #{tpu_custom_call.1} parent=1 // pred_check_branch
      %1564 = sbr.rel (0) target = $region45
    $region44: #{tpu_custom_call.1} parent=1 // pred_region
      _
    $region45: #{tpu_custom_call.1} parent=1 // pred_fallthru
      _
    %1565 = vsyncpa [#allocation5], 1

</llo_original>
